<compile_context>
chip_gen: v6e
topology: v6e:2x2x1
jax: 0.10.0
libtpu: 0.0.40
codegen_flags: <defaults>
</compile_context>

<pallas_src>
import functools
import math

import jax
import jax.numpy as jnp
from jax.experimental import pallas as pl
from jax.experimental.pallas import tpu as pltpu


# -----------------------------------------------------------------------------
# Pallas kernel: one EncoderLayer (optionally + final encoder LayerNorm)
# -----------------------------------------------------------------------------
def encoder_layer_kernel(*refs, n_heads, tq, seq_len, d_model,
                         output_attention, apply_final_norm):
    """Processes one (batch, query-tile) grid cell.

        new_x, A = MHSA(x, x, x)
        x = LayerNorm1(x + new_x)
        y = Conv2(ReLU(Conv1(x)))      # kernel_size=1 -> pointwise matmuls
        out = LayerNorm2(x + y)        # (+ fused final LayerNorm on last layer)
    """
    (xq_ref, xkv_ref,
     wq_ref, bq_ref, wkv_ref, bkv_ref, wo_ref, bo_ref,
     w1_ref, b1_ref, w2_ref, b2_ref,
     g1_ref, be1_ref, g2_ref, be2_ref) = refs[:16]
    i = 16
    if apply_final_norm:
        gf_ref, bf_ref = refs[i], refs[i + 1]
        i += 2
    y_ref = refs[i]
    attn_ref = refs[i + 1] if output_attention else None

    H = n_heads
    L = seq_len
    D = d_model
    dh = D // H
    scale = 1.0 / math.sqrt(dh)

    xq = xq_ref[0]                       # (TQ, D) fp32 residual stream
    xkv = xkv_ref[0]                     # (L,  D) fp32 (keys / values source)

    # --- projections: bf16 MXU matmuls, fp32 accumulation ---------------------
    q = jnp.dot(xq.astype(jnp.bfloat16), wq_ref[...],
                preferred_element_type=jnp.float32) + bq_ref[...]          # (TQ, D)
    kv = jnp.dot(xkv.astype(jnp.bfloat16), wkv_ref[...],
                 preferred_element_type=jnp.float32) + bkv_ref[...]        # (L, 2D)
    k = kv[:, :D]
    v = kv[:, D:]

    # head split (matches PyTorch .view(B, L, H, dh) column ordering)
    qh = q.reshape(tq, H, dh).transpose(1, 0, 2).astype(jnp.bfloat16)      # (H, TQ, dh)
    kh = k.reshape(L, H, dh).transpose(1, 0, 2).astype(jnp.bfloat16)       # (H, L,  dh)
    vh = v.reshape(L, H, dh).transpose(1, 0, 2).astype(jnp.bfloat16)       # (H, L,  dh)

    # --- attention: batched einsums, contraction on the last dims -------------
    s = jnp.einsum("hqe,hke->hqk", qh, kh,
                   preferred_element_type=jnp.float32) * scale             # (H, TQ, L)
    s = s - jnp.max(s, axis=-1, keepdims=True)
    e = jnp.exp(s)
    denom = jnp.sum(e, axis=-1, keepdims=True)
    a = e * pl.reciprocal(denom, approx=True)                              # softmax
    if output_attention:
        attn_ref[0] = a                                                    # single store

    ctx = jnp.einsum("hqk,hkd->hqd", a.astype(jnp.bfloat16), vh,
                     preferred_element_type=jnp.float32)                   # (H, TQ, dh)
    ctx = ctx.transpose(1, 0, 2).reshape(tq, D)
    attn_out = jnp.dot(ctx.astype(jnp.bfloat16), wo_ref[...],
                       preferred_element_type=jnp.float32) + bo_ref[...]   # (TQ, D)

    # --- residual + LayerNorm 1 -----------------------------------------------
    h1 = xq + attn_out
    mu = jnp.mean(h1, axis=-1, keepdims=True)
    var = jnp.mean((h1 - mu) ** 2, axis=-1, keepdims=True)
    h1 = (h1 - mu) * jax.lax.rsqrt(var + 1e-5) * g1_ref[...] + be1_ref[...]

    # --- pointwise FFN (Conv1d kernel_size=1 == matmul) ------------------------
    f = jnp.dot(h1.astype(jnp.bfloat16), w1_ref[...],
                preferred_element_type=jnp.float32) + b1_ref[...]
    f = jnp.maximum(f, 0.0)                                                # ReLU
    f = jnp.dot(f.astype(jnp.bfloat16), w2_ref[...],
                preferred_element_type=jnp.float32) + b2_ref[...]

    # --- residual + LayerNorm 2 -----------------------------------------------
    z = h1 + f
    mu2 = jnp.mean(z, axis=-1, keepdims=True)
    var2 = jnp.mean((z - mu2) ** 2, axis=-1, keepdims=True)
    out = (z - mu2) * jax.lax.rsqrt(var2 + 1e-5) * g2_ref[...] + be2_ref[...]

    # --- fused final encoder LayerNorm (last layer only) -----------------------
    if apply_final_norm:
        mu3 = jnp.mean(out, axis=-1, keepdims=True)
        var3 = jnp.mean((out - mu3) ** 2, axis=-1, keepdims=True)
        out = (out - mu3) * jax.lax.rsqrt(var3 + 1e-5) * gf_ref[...] + bf_ref[...]

    y_ref[0] = out.astype(y_ref.dtype)


# -----------------------------------------------------------------------------
# Wrappers
# -----------------------------------------------------------------------------
def _rep_spec(shape):
    """BlockSpec for a parameter replicated across the (batch, q-block) grid."""
    n = len(shape)
    return pl.BlockSpec(shape, lambda b, q, _n=n: (0,) * _n)


def encoder_layer_pallas(x, params, n_heads, *, output_attention=True,
                         final_norm_params=None, q_block=None,
                         vmem_limit_bytes=None):
    B, L, D = x.shape
    H = n_heads
    assert D % H == 0

    # Query-tile size: full sequence when small, 128-row tiles when large.
    if q_block is None:
        TQ = L if L <= 256 else (128 if L % 128 == 0 else L)
    else:
        TQ = q_block
    assert L % TQ == 0
    nQ = L // TQ

    bf16 = jnp.bfloat16
    # bf16 weights (halves weight DMA, native MXU dtype); biases / LN params fp32.
    wq = params["wq"].astype(bf16)
    wkv = jnp.concatenate([params["wk"], params["wv"]], axis=1).astype(bf16)
    bkv = jnp.concatenate([params["bk"], params["bv"]], axis=1)
    wo = params["wo"].astype(bf16)
    w1 = params["w1"].astype(bf16)
    w2 = params["w2"].astype(bf16)

    weights = [wq, params["bq"], wkv, bkv, wo, params["bo"],
               w1, params["b1"], w2, params["b2"],
               params["g1"], params["be1"], params["g2"], params["be2"]]
    apply_final_norm = final_norm_params is not None
    if apply_final_norm:
        weights += [final_norm_params["g"], final_norm_params["b"]]

    kernel = functools.partial(
        encoder_layer_kernel, n_heads=H, tq=TQ, seq_len=L, d_model=D,
        output_attention=output_attention, apply_final_norm=apply_final_norm)

    if output_attention:
        out_shape = (jax.ShapeDtypeStruct((B, L, D), x.dtype),
                     jax.ShapeDtypeStruct((B, H, L, L), jnp.float32))
        out_specs = (pl.BlockSpec((1, TQ, D), lambda b, q: (b, q, 0)),
                     pl.BlockSpec((1, H, TQ, L), lambda b, q: (b, 0, q, 0)))
    else:
        out_shape = jax.ShapeDtypeStruct((B, L, D), x.dtype)
        out_specs = pl.BlockSpec((1, TQ, D), lambda b, q: (b, q, 0))

    in_specs = ([pl.BlockSpec((1, TQ, D), lambda b, q: (b, q, 0)),   # query tile
                 pl.BlockSpec((1, L, D), lambda b, q: (b, 0, 0))]    # full seq (K/V)
                + [_rep_spec(w.shape) for w in weights])

    compiler_params = pltpu.CompilerParams(
        dimension_semantics=("parallel", "parallel"),
        vmem_limit_bytes=vmem_limit_bytes)

    outs = pl.pallas_call(
        kernel,
        out_shape=out_shape,
        grid=(B, nQ),
        in_specs=in_specs,
        out_specs=out_specs,
        compiler_params=compiler_params,
    )(x, x, *weights)

    if output_attention:
        y, attn = outs
        return y, attn
    return outs


def encoder_forward(x, layer_params, norm_params=None, *, n_heads,
                    attn_mask=None, output_attention=True):
    """Mirrors Encoder.forward with conv_layers=None and norm_layer=LayerNorm.

    The final LayerNorm is fused into the last EncoderLayer kernel.
    With output_attention=False, attention maps are neither stored nor returned
    (Informer's default), removing the (B,H,L,L) HBM writeback.
    """
    del attn_mask  # None in this configuration
    attns = []
    n_layers = len(layer_params)
    for i, p in enumerate(layer_params):
        fused_norm = norm_params if i == n_layers - 1 else None
        if output_attention:
            x, a = encoder_layer_pallas(x, p, n_heads, output_attention=True,
                                        final_norm_params=fused_norm)
            attns.append(a)
        else:
            x = encoder_layer_pallas(x, p, n_heads, output_attention=False,
                                     final_norm_params=fused_norm)
            attns.append(None)
    return x, attns


# -----------------------------------------------------------------------------
# Pure-JAX reference (matches the PyTorch module semantics) for validation
# -----------------------------------------------------------------------------
def _layer_norm_ref(x, g, b, eps=1e-5):
    mu = jnp.mean(x, axis=-1, keepdims=True)
    var = jnp.mean((x - mu) ** 2, axis=-1, keepdims=True)
    return (x - mu) * jax.lax.rsqrt(var + eps) * g + b


def encoder_forward_ref(x, layer_params, norm_params, n_heads):
    attns = []
    for p in layer_params:
        B, L, D = x.shape
        H = n_heads
        dh = D // H
        q = (x @ p["wq"] + p["bq"]).reshape(B, L, H, dh)
        k = (x @ p["wk"] + p["bk"]).reshape(B, L, H, dh)
        v = (x @ p["wv"] + p["bv"]).reshape(B, L, H, dh)
        s = jnp.einsum("blhe,bshe->bhls", q, k) / math.sqrt(dh)
        a = jax.nn.softmax(s, axis=-1)
        o = jnp.einsum("bhls,bshd->blhd", a, v).reshape(B, L, D)
        o = o @ p["wo"] + p["bo"]
        h = _layer_norm_ref(x + o, p["g1"], p["be1"])
        f = jnp.maximum(h @ p["w1"] + p["b1"], 0.0)
        f = f @ p["w2"] + p["b2"]
        x = _layer_norm_ref(h + f, p["g2"], p["be2"])
        attns.append(a)
    x = _layer_norm_ref(x, norm_params["g"], norm_params["b"])
    return x, attns


# -----------------------------------------------------------------------------
# Deterministic parameter construction + demo
# -----------------------------------------------------------------------------
def make_layer_params(key, d_model, d_ff):
    ks = jax.random.split(key, 6)
    s = 0.02
    return dict(
        wq=s * jax.random.normal(ks[0], (d_model, d_model), jnp.float32),
        bq=jnp.zeros((1, d_model), jnp.float32),
        wk=s * jax.random.normal(ks[1], (d_model, d_model), jnp.float32),
        bk=jnp.zeros((1, d_model), jnp.float32),
        wv=s * jax.random.normal(ks[2], (d_model, d_model), jnp.float32),
        bv=jnp.zeros((1, d_model), jnp.float32),
        wo=s * jax.random.normal(ks[3], (d_model, d_model), jnp.float32),
        bo=jnp.zeros((1, d_model), jnp.float32),
        w1=s * jax.random.normal(ks[4], (d_model, d_ff), jnp.float32),
        b1=jnp.zeros((1, d_ff), jnp.float32),
        w2=s * jax.random.normal(ks[5], (d_ff, d_model), jnp.float32),
        b2=jnp.zeros((1, d_model), jnp.float32),
        g1=jnp.ones((1, d_model), jnp.float32),
        be1=jnp.zeros((1, d_model), jnp.float32),
        g2=jnp.ones((1, d_model), jnp.float32),
        be2=jnp.zeros((1, d_model), jnp.float32),
    )


if __name__ == "__main__":
    B, L, D, H, D_FF, N_LAYERS = 2, 16, 64, 4, 128, 2

    key = jax.random.PRNGKey(0)
    key, xk = jax.random.split(key)
    x = jax.random.normal(xk, (B, L, D), dtype=jnp.float32)

    layer_params = []
    for _ in range(N_LAYERS):
        key, lk = jax.random.split(key)
        layer_params.append(make_layer_params(lk, D, D_FF))
    norm_params = dict(g=jnp.ones((1, D), jnp.float32),
                       b=jnp.zeros((1, D), jnp.float32))

    # full path: returns the per-layer attention maps (output_attention=True)
    out, attns = encoder_forward(x, layer_params, norm_params, n_heads=H,
                                 output_attention=True)
    out = jax.block_until_ready(out)
    attns = [jax.block_until_ready(a) for a in attns]
    assert out.shape == (B, L, D)
    assert len(attns) == N_LAYERS and attns[0].shape == (B, H, L, L)

    # numerics vs the fp32 pure-JAX reference (bf16 MXU + approx reciprocal)
    ref_out, ref_attns = encoder_forward_ref(x, layer_params, norm_params, n_heads=H)
    assert jnp.allclose(out, ref_out, atol=5e-2, rtol=5e-2)
    for a, ra in zip(attns, ref_attns):
        assert jnp.allclose(a, ra, atol=5e-2, rtol=5e-2)

    # fast path: no attention-map writeback (Informer default output_attention=False)
    out_fast, _ = encoder_forward(x, layer_params, norm_params, n_heads=H,
                                  output_attention=False)
    out_fast = jax.block_until_ready(out_fast)
    assert jnp.allclose(out_fast, out, atol=1e-2, rtol=1e-2)

    print("KERNEL_OK")
</pallas_src>

<mosaic_0001>
module attributes {stable_mosaic.version = 11 : i64} {
  func.func @encoder_layer_kernel(%arg0: i32, %arg1: i32, %arg2: memref<1x16x64xf32, #tpu.memory_space<vmem>>, %arg3: memref<1x16x64xf32, #tpu.memory_space<vmem>>, %arg4: memref<64x64xbf16, #tpu.memory_space<vmem>>, %arg5: memref<1x64xf32, #tpu.memory_space<vmem>>, %arg6: memref<64x128xbf16, #tpu.memory_space<vmem>>, %arg7: memref<1x128xf32, #tpu.memory_space<vmem>>, %arg8: memref<64x64xbf16, #tpu.memory_space<vmem>>, %arg9: memref<1x64xf32, #tpu.memory_space<vmem>>, %arg10: memref<64x128xbf16, #tpu.memory_space<vmem>>, %arg11: memref<1x128xf32, #tpu.memory_space<vmem>>, %arg12: memref<128x64xbf16, #tpu.memory_space<vmem>>, %arg13: memref<1x64xf32, #tpu.memory_space<vmem>>, %arg14: memref<1x64xf32, #tpu.memory_space<vmem>>, %arg15: memref<1x64xf32, #tpu.memory_space<vmem>>, %arg16: memref<1x64xf32, #tpu.memory_space<vmem>>, %arg17: memref<1x64xf32, #tpu.memory_space<vmem>>, %arg18: memref<1x16x64xf32, #tpu.memory_space<vmem>>, %arg19: memref<1x4x16x16xf32, #tpu.memory_space<vmem>>) attributes {dimension_semantics = [#tpu.dimension_semantics<parallel>, #tpu.dimension_semantics<parallel>], iteration_bounds = array<i64: 2, 1>, scalar_prefetch = 0 : i64, scratch_operands = 0 : i64, tpu.core_type = #tpu.core_type<tc>, window_params = [{transform_indices = @transform_0, window_bounds = array<i64: 1, 16, 64>}, {transform_indices = @transform_1, window_bounds = array<i64: 1, 16, 64>}, {pipeline_mode = #tpu.pipeline_mode<synchronous>, transform_indices = @transform_2, window_bounds = array<i64: 64, 64>}, {pipeline_mode = #tpu.pipeline_mode<synchronous>, transform_indices = @transform_3, window_bounds = array<i64: 1, 64>}, {pipeline_mode = #tpu.pipeline_mode<synchronous>, transform_indices = @transform_4, window_bounds = array<i64: 64, 128>}, {pipeline_mode = #tpu.pipeline_mode<synchronous>, transform_indices = @transform_5, window_bounds = array<i64: 1, 128>}, {pipeline_mode = #tpu.pipeline_mode<synchronous>, transform_indices = @transform_6, window_bounds = array<i64: 64, 64>}, {pipeline_mode = #tpu.pipeline_mode<synchronous>, transform_indices = @transform_7, window_bounds = array<i64: 1, 64>}, {pipeline_mode = #tpu.pipeline_mode<synchronous>, transform_indices = @transform_8, window_bounds = array<i64: 64, 128>}, {pipeline_mode = #tpu.pipeline_mode<synchronous>, transform_indices = @transform_9, window_bounds = array<i64: 1, 128>}, {pipeline_mode = #tpu.pipeline_mode<synchronous>, transform_indices = @transform_10, window_bounds = array<i64: 128, 64>}, {pipeline_mode = #tpu.pipeline_mode<synchronous>, transform_indices = @transform_11, window_bounds = array<i64: 1, 64>}, {pipeline_mode = #tpu.pipeline_mode<synchronous>, transform_indices = @transform_12, window_bounds = array<i64: 1, 64>}, {pipeline_mode = #tpu.pipeline_mode<synchronous>, transform_indices = @transform_13, window_bounds = array<i64: 1, 64>}, {pipeline_mode = #tpu.pipeline_mode<synchronous>, transform_indices = @transform_14, window_bounds = array<i64: 1, 64>}, {pipeline_mode = #tpu.pipeline_mode<synchronous>, transform_indices = @transform_15, window_bounds = array<i64: 1, 64>}, {transform_indices = @transform_16, window_bounds = array<i64: 1, 16, 64>}, {transform_indices = @transform_17, window_bounds = array<i64: 1, 4, 16, 16>}]} {
    %c0 = arith.constant 0 : index
    %c0_0 = arith.constant 0 : index
    %c0_1 = arith.constant 0 : index
    %0 = vector.load %arg2[%c0, %c0_0, %c0_1] : memref<1x16x64xf32, #tpu.memory_space<vmem>>, vector<1x16x64xf32>
    %1 = vector.shape_cast %0 : vector<1x16x64xf32> to vector<16x64xf32>
    %c0_2 = arith.constant 0 : index
    %c0_3 = arith.constant 0 : index
    %c0_4 = arith.constant 0 : index
    %2 = vector.load %arg3[%c0_2, %c0_3, %c0_4] : memref<1x16x64xf32, #tpu.memory_space<vmem>>, vector<1x16x64xf32>
    %3 = vector.shape_cast %2 : vector<1x16x64xf32> to vector<16x64xf32>
    %4 = arith.truncf %1 : vector<16x64xf32> to vector<16x64xbf16>
    %c0_5 = arith.constant 0 : index
    %c0_6 = arith.constant 0 : index
    %5 = vector.load %arg4[%c0_5, %c0_6] : memref<64x64xbf16, #tpu.memory_space<vmem>>, vector<64x64xbf16>
    %cst = arith.constant dense<0.000000e+00> : vector<16x64xf32>
    %6 = tpu.matmul %4, %5, %cst {dimension_numbers = #tpu.dot_dimension_numbers<[1], [0], [0], [1], [0, 0, 1, 1], [], []>} : vector<16x64xbf16>, vector<64x64xbf16>, vector<16x64xf32> -> vector<16x64xf32>
    %c0_7 = arith.constant 0 : index
    %c0_8 = arith.constant 0 : index
    %7 = vector.load %arg5[%c0_7, %c0_8] : memref<1x64xf32, #tpu.memory_space<vmem>>, vector<1x64xf32>
    %8 = vector.broadcast %7 : vector<1x64xf32> to vector<16x64xf32>
    %9 = arith.addf %6, %8 : vector<16x64xf32>
    %10 = arith.truncf %3 : vector<16x64xf32> to vector<16x64xbf16>
    %c0_9 = arith.constant 0 : index
    %c0_10 = arith.constant 0 : index
    %11 = vector.load %arg6[%c0_9, %c0_10] : memref<64x128xbf16, #tpu.memory_space<vmem>>, vector<64x128xbf16>
    %cst_11 = arith.constant dense<0.000000e+00> : vector<16x128xf32>
    %12 = tpu.matmul %10, %11, %cst_11 {dimension_numbers = #tpu.dot_dimension_numbers<[1], [0], [0], [1], [0, 0, 1, 1], [], []>} : vector<16x64xbf16>, vector<64x128xbf16>, vector<16x128xf32> -> vector<16x128xf32>
    %c0_12 = arith.constant 0 : index
    %c0_13 = arith.constant 0 : index
    %13 = vector.load %arg7[%c0_12, %c0_13] : memref<1x128xf32, #tpu.memory_space<vmem>>, vector<1x128xf32>
    %14 = vector.broadcast %13 : vector<1x128xf32> to vector<16x128xf32>
    %15 = arith.addf %12, %14 : vector<16x128xf32>
    %16 = vector.extract_strided_slice %15 {offsets = [0, 0], sizes = [16, 64], strides = [1, 1]} : vector<16x128xf32> to vector<16x64xf32>
    %17 = vector.extract_strided_slice %15 {offsets = [0, 64], sizes = [16, 64], strides = [1, 1]} : vector<16x128xf32> to vector<16x64xf32>
    %18 = vector.shape_cast %9 : vector<16x64xf32> to vector<16x4x16xf32>
    %19 = tpu.transpose %18, [1, 0, 2] : vector<16x4x16xf32> -> vector<4x16x16xf32>
    %20 = arith.truncf %19 : vector<4x16x16xf32> to vector<4x16x16xbf16>
    %21 = vector.shape_cast %16 : vector<16x64xf32> to vector<16x4x16xf32>
    %22 = tpu.transpose %21, [1, 0, 2] : vector<16x4x16xf32> -> vector<4x16x16xf32>
    %23 = arith.truncf %22 : vector<4x16x16xf32> to vector<4x16x16xbf16>
    %24 = vector.shape_cast %17 : vector<16x64xf32> to vector<16x4x16xf32>
    %25 = tpu.transpose %24, [1, 0, 2] : vector<16x4x16xf32> -> vector<4x16x16xf32>
    %26 = arith.truncf %25 : vector<4x16x16xf32> to vector<4x16x16xbf16>
    "tpu.trace_start"() <{level = 10 : i32, message = "hqe,hke->hqk"}> : () -> ()
    %cst_14 = arith.constant dense<0.000000e+00> : vector<4x16x16xf32>
    %27 = tpu.matmul %20, %23, %cst_14 {dimension_numbers = #tpu.dot_dimension_numbers<[2], [2], [1], [1], [0, 0, 0, 1, 1, 1], [0], [0]>} : vector<4x16x16xbf16>, vector<4x16x16xbf16>, vector<4x16x16xf32> -> vector<4x16x16xf32>
    "tpu.trace_stop"() : () -> ()
    %cst_15 = arith.constant 2.500000e-01 : f32
    %28 = vector.broadcast %cst_15 : f32 to vector<4x16x16xf32>
    %29 = arith.mulf %27, %28 : vector<4x16x16xf32>
    %cst_16 = arith.constant dense<0xFF800000> : vector<4x16xf32>
    %30 = vector.multi_reduction <maximumf>, %29, %cst_16 [2] : vector<4x16x16xf32> to vector<4x16xf32>
    %31 = vector.shape_cast %30 : vector<4x16xf32> to vector<4x16x1xf32>
    %32 = vector.broadcast %31 : vector<4x16x1xf32> to vector<4x16x16xf32>
    %33 = arith.subf %29, %32 : vector<4x16x16xf32>
    %34 = math.exp %33 : vector<4x16x16xf32>
    %cst_17 = arith.constant dense<0.000000e+00> : vector<4x16xf32>
    %35 = vector.multi_reduction <add>, %34, %cst_17 [2] : vector<4x16x16xf32> to vector<4x16xf32>
    %36 = vector.shape_cast %35 : vector<4x16xf32> to vector<4x16x1xf32>
    %37 = tpu.reciprocal %36 {approx = true} : vector<4x16x1xf32> -> vector<4x16x1xf32>
    %38 = vector.broadcast %37 : vector<4x16x1xf32> to vector<4x16x16xf32>
    %39 = arith.mulf %34, %38 : vector<4x16x16xf32>
    %c0_18 = arith.constant 0 : index
    %c0_19 = arith.constant 0 : index
    %c0_20 = arith.constant 0 : index
    %c0_21 = arith.constant 0 : index
    %40 = vector.load %arg19[%c0_18, %c0_19, %c0_20, %c0_21] : memref<1x4x16x16xf32, #tpu.memory_space<vmem>>, vector<1x4x16x16xf32>
    %41 = vector.shape_cast %40 : vector<1x4x16x16xf32> to vector<4x16x16xf32>
    %42 = vector.shape_cast %39 : vector<4x16x16xf32> to vector<1x4x16x16xf32>
    tpu.vector_store %arg19[%c0_18, %c0_19, %c0_20, %c0_21], %42 {strides = array<i32>} : memref<1x4x16x16xf32, #tpu.memory_space<vmem>>, vector<1x4x16x16xf32>,
    %43 = arith.truncf %39 : vector<4x16x16xf32> to vector<4x16x16xbf16>
    "tpu.trace_start"() <{level = 10 : i32, message = "hqk,hkd->hqd"}> : () -> ()
    %cst_22 = arith.constant dense<0.000000e+00> : vector<4x16x16xf32>
    %44 = tpu.matmul %43, %26, %cst_22 {dimension_numbers = #tpu.dot_dimension_numbers<[2], [1], [1], [2], [0, 0, 0, 1, 1, 2], [0], [0]>} : vector<4x16x16xbf16>, vector<4x16x16xbf16>, vector<4x16x16xf32> -> vector<4x16x16xf32>
    "tpu.trace_stop"() : () -> ()
    %45 = tpu.transpose %44, [1, 0, 2] : vector<4x16x16xf32> -> vector<16x4x16xf32>
    %46 = vector.shape_cast %45 : vector<16x4x16xf32> to vector<16x64xf32>
    %47 = arith.truncf %46 : vector<16x64xf32> to vector<16x64xbf16>
    %c0_23 = arith.constant 0 : index
    %c0_24 = arith.constant 0 : index
    %48 = vector.load %arg8[%c0_23, %c0_24] : memref<64x64xbf16, #tpu.memory_space<vmem>>, vector<64x64xbf16>
    %cst_25 = arith.constant dense<0.000000e+00> : vector<16x64xf32>
    %49 = tpu.matmul %47, %48, %cst_25 {dimension_numbers = #tpu.dot_dimension_numbers<[1], [0], [0], [1], [0, 0, 1, 1], [], []>} : vector<16x64xbf16>, vector<64x64xbf16>, vector<16x64xf32> -> vector<16x64xf32>
    %c0_26 = arith.constant 0 : index
    %c0_27 = arith.constant 0 : index
    %50 = vector.load %arg9[%c0_26, %c0_27] : memref<1x64xf32, #tpu.memory_space<vmem>>, vector<1x64xf32>
    %51 = vector.broadcast %50 : vector<1x64xf32> to vector<16x64xf32>
    %52 = arith.addf %49, %51 : vector<16x64xf32>
    %53 = arith.addf %1, %52 : vector<16x64xf32>
    %cst_28 = arith.constant dense<0.000000e+00> : vector<16xf32>
    %54 = vector.multi_reduction <add>, %53, %cst_28 [1] : vector<16x64xf32> to vector<16xf32>
    %55 = vector.shape_cast %54 : vector<16xf32> to vector<16x1xf32>
    %cst_29 = arith.constant 6.400000e+01 : f32
    %56 = vector.broadcast %cst_29 : f32 to vector<16x1xf32>
    %57 = arith.divf %55, %56 : vector<16x1xf32>
    %58 = vector.broadcast %57 : vector<16x1xf32> to vector<16x64xf32>
    %59 = arith.subf %53, %58 : vector<16x64xf32>
    %60 = arith.mulf %59, %59 : vector<16x64xf32>
    %cst_30 = arith.constant dense<0.000000e+00> : vector<16xf32>
    %61 = vector.multi_reduction <add>, %60, %cst_30 [1] : vector<16x64xf32> to vector<16xf32>
    %62 = vector.shape_cast %61 : vector<16xf32> to vector<16x1xf32>
    %cst_31 = arith.constant 6.400000e+01 : f32
    %63 = vector.broadcast %cst_31 : f32 to vector<16x1xf32>
    %64 = arith.divf %62, %63 : vector<16x1xf32>
    %65 = vector.broadcast %57 : vector<16x1xf32> to vector<16x64xf32>
    %66 = arith.subf %53, %65 : vector<16x64xf32>
    %cst_32 = arith.constant 9.99999974E-6 : f32
    %67 = vector.broadcast %cst_32 : f32 to vector<16x1xf32>
    %68 = arith.addf %64, %67 : vector<16x1xf32>
    %69 = math.rsqrt %68 : vector<16x1xf32>
    %70 = vector.broadcast %69 : vector<16x1xf32> to vector<16x64xf32>
    %71 = arith.mulf %66, %70 : vector<16x64xf32>
    %c0_33 = arith.constant 0 : index
    %c0_34 = arith.constant 0 : index
    %72 = vector.load %arg14[%c0_33, %c0_34] : memref<1x64xf32, #tpu.memory_space<vmem>>, vector<1x64xf32>
    %73 = vector.broadcast %72 : vector<1x64xf32> to vector<16x64xf32>
    %74 = arith.mulf %71, %73 : vector<16x64xf32>
    %c0_35 = arith.constant 0 : index
    %c0_36 = arith.constant 0 : index
    %75 = vector.load %arg15[%c0_35, %c0_36] : memref<1x64xf32, #tpu.memory_space<vmem>>, vector<1x64xf32>
    %76 = vector.broadcast %75 : vector<1x64xf32> to vector<16x64xf32>
    %77 = arith.addf %74, %76 : vector<16x64xf32>
    %78 = arith.truncf %77 : vector<16x64xf32> to vector<16x64xbf16>
    %c0_37 = arith.constant 0 : index
    %c0_38 = arith.constant 0 : index
    %79 = vector.load %arg10[%c0_37, %c0_38] : memref<64x128xbf16, #tpu.memory_space<vmem>>, vector<64x128xbf16>
    %cst_39 = arith.constant dense<0.000000e+00> : vector<16x128xf32>
    %80 = tpu.matmul %78, %79, %cst_39 {dimension_numbers = #tpu.dot_dimension_numbers<[1], [0], [0], [1], [0, 0, 1, 1], [], []>} : vector<16x64xbf16>, vector<64x128xbf16>, vector<16x128xf32> -> vector<16x128xf32>
    %c0_40 = arith.constant 0 : index
    %c0_41 = arith.constant 0 : index
    %81 = vector.load %arg11[%c0_40, %c0_41] : memref<1x128xf32, #tpu.memory_space<vmem>>, vector<1x128xf32>
    %82 = vector.broadcast %81 : vector<1x128xf32> to vector<16x128xf32>
    %83 = arith.addf %80, %82 : vector<16x128xf32>
    %cst_42 = arith.constant 0.000000e+00 : f32
    %84 = vector.broadcast %cst_42 : f32 to vector<16x128xf32>
    %85 = arith.maximumf %83, %84 : vector<16x128xf32>
    %86 = arith.truncf %85 : vector<16x128xf32> to vector<16x128xbf16>
    %c0_43 = arith.constant 0 : index
    %c0_44 = arith.constant 0 : index
    %87 = vector.load %arg12[%c0_43, %c0_44] : memref<128x64xbf16, #tpu.memory_space<vmem>>, vector<128x64xbf16>
    %cst_45 = arith.constant dense<0.000000e+00> : vector<16x64xf32>
    %88 = tpu.matmul %86, %87, %cst_45 {dimension_numbers = #tpu.dot_dimension_numbers<[1], [0], [0], [1], [0, 0, 1, 1], [], []>} : vector<16x128xbf16>, vector<128x64xbf16>, vector<16x64xf32> -> vector<16x64xf32>
    %c0_46 = arith.constant 0 : index
    %c0_47 = arith.constant 0 : index
    %89 = vector.load %arg13[%c0_46, %c0_47] : memref<1x64xf32, #tpu.memory_space<vmem>>, vector<1x64xf32>
    %90 = vector.broadcast %89 : vector<1x64xf32> to vector<16x64xf32>
    %91 = arith.addf %88, %90 : vector<16x64xf32>
    %92 = arith.addf %77, %91 : vector<16x64xf32>
    %cst_48 = arith.constant dense<0.000000e+00> : vector<16xf32>
    %93 = vector.multi_reduction <add>, %92, %cst_48 [1] : vector<16x64xf32> to vector<16xf32>
    %94 = vector.shape_cast %93 : vector<16xf32> to vector<16x1xf32>
    %cst_49 = arith.constant 6.400000e+01 : f32
    %95 = vector.broadcast %cst_49 : f32 to vector<16x1xf32>
    %96 = arith.divf %94, %95 : vector<16x1xf32>
    %97 = vector.broadcast %96 : vector<16x1xf32> to vector<16x64xf32>
    %98 = arith.subf %92, %97 : vector<16x64xf32>
    %99 = arith.mulf %98, %98 : vector<16x64xf32>
    %cst_50 = arith.constant dense<0.000000e+00> : vector<16xf32>
    %100 = vector.multi_reduction <add>, %99, %cst_50 [1] : vector<16x64xf32> to vector<16xf32>
    %101 = vector.shape_cast %100 : vector<16xf32> to vector<16x1xf32>
    %cst_51 = arith.constant 6.400000e+01 : f32
    %102 = vector.broadcast %cst_51 : f32 to vector<16x1xf32>
    %103 = arith.divf %101, %102 : vector<16x1xf32>
    %104 = vector.broadcast %96 : vector<16x1xf32> to vector<16x64xf32>
    %105 = arith.subf %92, %104 : vector<16x64xf32>
    %cst_52 = arith.constant 9.99999974E-6 : f32
    %106 = vector.broadcast %cst_52 : f32 to vector<16x1xf32>
    %107 = arith.addf %103, %106 : vector<16x1xf32>
    %108 = math.rsqrt %107 : vector<16x1xf32>
    %109 = vector.broadcast %108 : vector<16x1xf32> to vector<16x64xf32>
    %110 = arith.mulf %105, %109 : vector<16x64xf32>
    %c0_53 = arith.constant 0 : index
    %c0_54 = arith.constant 0 : index
    %111 = vector.load %arg16[%c0_53, %c0_54] : memref<1x64xf32, #tpu.memory_space<vmem>>, vector<1x64xf32>
    %112 = vector.broadcast %111 : vector<1x64xf32> to vector<16x64xf32>
    %113 = arith.mulf %110, %112 : vector<16x64xf32>
    %c0_55 = arith.constant 0 : index
    %c0_56 = arith.constant 0 : index
    %114 = vector.load %arg17[%c0_55, %c0_56] : memref<1x64xf32, #tpu.memory_space<vmem>>, vector<1x64xf32>
    %115 = vector.broadcast %114 : vector<1x64xf32> to vector<16x64xf32>
    %116 = arith.addf %113, %115 : vector<16x64xf32>
    %c0_57 = arith.constant 0 : index
    %c0_58 = arith.constant 0 : index
    %c0_59 = arith.constant 0 : index
    %117 = vector.load %arg18[%c0_57, %c0_58, %c0_59] : memref<1x16x64xf32, #tpu.memory_space<vmem>>, vector<1x16x64xf32>
    %118 = vector.shape_cast %117 : vector<1x16x64xf32> to vector<16x64xf32>
    %119 = vector.shape_cast %116 : vector<16x64xf32> to vector<1x16x64xf32>
    tpu.vector_store %arg18[%c0_57, %c0_58, %c0_59], %119 {strides = array<i32>} : memref<1x16x64xf32, #tpu.memory_space<vmem>>, vector<1x16x64xf32>,
    return
  }
  func.func @transform_0(%arg0: i32, %arg1: i32) -> (i32, i32, i32) {
    %c0_i32 = arith.constant 0 : i32
    %c0_i32_0 = arith.constant 0 : i32
    return %arg0, %arg1, %c0_i32 : i32, i32, i32
  }
  func.func @transform_1(%arg0: i32, %arg1: i32) -> (i32, i32, i32) {
    %c0_i32 = arith.constant 0 : i32
    %c0_i32_0 = arith.constant 0 : i32
    %c0_i32_1 = arith.constant 0 : i32
    return %arg0, %c0_i32, %c0_i32_0 : i32, i32, i32
  }
  func.func @transform_2(%arg0: i32, %arg1: i32) -> (i32, i32) {
    %c0_i32 = arith.constant 0 : i32
    %c0_i32_0 = arith.constant 0 : i32
    %c0_i32_1 = arith.constant 0 : i32
    return %c0_i32, %c0_i32_0 : i32, i32
  }
  func.func @transform_3(%arg0: i32, %arg1: i32) -> (i32, i32) {
    %c0_i32 = arith.constant 0 : i32
    %c0_i32_0 = arith.constant 0 : i32
    %c0_i32_1 = arith.constant 0 : i32
    return %c0_i32, %c0_i32_0 : i32, i32
  }
  func.func @transform_4(%arg0: i32, %arg1: i32) -> (i32, i32) {
    %c0_i32 = arith.constant 0 : i32
    %c0_i32_0 = arith.constant 0 : i32
    %c0_i32_1 = arith.constant 0 : i32
    return %c0_i32, %c0_i32_0 : i32, i32
  }
  func.func @transform_5(%arg0: i32, %arg1: i32) -> (i32, i32) {
    %c0_i32 = arith.constant 0 : i32
    %c0_i32_0 = arith.constant 0 : i32
    %c0_i32_1 = arith.constant 0 : i32
    return %c0_i32, %c0_i32_0 : i32, i32
  }
  func.func @transform_6(%arg0: i32, %arg1: i32) -> (i32, i32) {
    %c0_i32 = arith.constant 0 : i32
    %c0_i32_0 = arith.constant 0 : i32
    %c0_i32_1 = arith.constant 0 : i32
    return %c0_i32, %c0_i32_0 : i32, i32
  }
  func.func @transform_7(%arg0: i32, %arg1: i32) -> (i32, i32) {
    %c0_i32 = arith.constant 0 : i32
    %c0_i32_0 = arith.constant 0 : i32
    %c0_i32_1 = arith.constant 0 : i32
    return %c0_i32, %c0_i32_0 : i32, i32
  }
  func.func @transform_8(%arg0: i32, %arg1: i32) -> (i32, i32) {
    %c0_i32 = arith.constant 0 : i32
    %c0_i32_0 = arith.constant 0 : i32
    %c0_i32_1 = arith.constant 0 : i32
    return %c0_i32, %c0_i32_0 : i32, i32
  }
  func.func @transform_9(%arg0: i32, %arg1: i32) -> (i32, i32) {
    %c0_i32 = arith.constant 0 : i32
    %c0_i32_0 = arith.constant 0 : i32
    %c0_i32_1 = arith.constant 0 : i32
    return %c0_i32, %c0_i32_0 : i32, i32
  }
  func.func @transform_10(%arg0: i32, %arg1: i32) -> (i32, i32) {
    %c0_i32 = arith.constant 0 : i32
    %c0_i32_0 = arith.constant 0 : i32
    %c0_i32_1 = arith.constant 0 : i32
    return %c0_i32, %c0_i32_0 : i32, i32
  }
  func.func @transform_11(%arg0: i32, %arg1: i32) -> (i32, i32) {
    %c0_i32 = arith.constant 0 : i32
    %c0_i32_0 = arith.constant 0 : i32
    %c0_i32_1 = arith.constant 0 : i32
    return %c0_i32, %c0_i32_0 : i32, i32
  }
  func.func @transform_12(%arg0: i32, %arg1: i32) -> (i32, i32) {
    %c0_i32 = arith.constant 0 : i32
    %c0_i32_0 = arith.constant 0 : i32
    %c0_i32_1 = arith.constant 0 : i32
    return %c0_i32, %c0_i32_0 : i32, i32
  }
  func.func @transform_13(%arg0: i32, %arg1: i32) -> (i32, i32) {
    %c0_i32 = arith.constant 0 : i32
    %c0_i32_0 = arith.constant 0 : i32
    %c0_i32_1 = arith.constant 0 : i32
    return %c0_i32, %c0_i32_0 : i32, i32
  }
  func.func @transform_14(%arg0: i32, %arg1: i32) -> (i32, i32) {
    %c0_i32 = arith.constant 0 : i32
    %c0_i32_0 = arith.constant 0 : i32
    %c0_i32_1 = arith.constant 0 : i32
    return %c0_i32, %c0_i32_0 : i32, i32
  }
  func.func @transform_15(%arg0: i32, %arg1: i32) -> (i32, i32) {
    %c0_i32 = arith.constant 0 : i32
    %c0_i32_0 = arith.constant 0 : i32
    %c0_i32_1 = arith.constant 0 : i32
    return %c0_i32, %c0_i32_0 : i32, i32
  }
  func.func @transform_16(%arg0: i32, %arg1: i32) -> (i32, i32, i32) {
    %c0_i32 = arith.constant 0 : i32
    %c0_i32_0 = arith.constant 0 : i32
    return %arg0, %arg1, %c0_i32 : i32, i32, i32
  }
  func.func @transform_17(%arg0: i32, %arg1: i32) -> (i32, i32, i32, i32) {
    %c0_i32 = arith.constant 0 : i32
    %c0_i32_0 = arith.constant 0 : i32
    %c0_i32_1 = arith.constant 0 : i32
    return %arg0, %c0_i32, %arg1, %c0_i32_0 : i32, i32, i32, i32
  }
}

</mosaic_0001>

<llo_original>
// kernel: tpu_custom_call.1
$region0: #{tpu_custom_call.1}
  #allocation0 [shape = 'u32[]', space=smem, size = 0x4, offset = 0x4, fixed_abs, tag = 'smem constant byte address 0x4 - core index']
  #allocation1 [shape = 'u32[144,128]{1,0:T(1,128)}', space=vmem, size = 0x12000, scoped, tag = 'internal scratch']
  %s0 = inlined_call_operand.vmem [shape: f32[2,16,64], index: 0, kind: input, shape index: {}]
  %s1 = inlined_call_operand.vmem [shape: f32[2,16,64], index: 1, kind: input, shape index: {}]
  %s2 = inlined_call_operand.vmem [shape: bf16[64,64], index: 2, kind: input, shape index: {}]
  %s3 = inlined_call_operand.vmem [shape: f32[1,64], index: 3, kind: input, shape index: {}]
  %s4 = inlined_call_operand.hbm [shape: bf16[64,128], index: 4, kind: input, shape index: {}]
  %s5 = inlined_call_operand.vmem [shape: f32[1,128], index: 5, kind: input, shape index: {}]
  %s6 = inlined_call_operand.hbm [shape: bf16[64,64], index: 6, kind: input, shape index: {}]
  %s7 = inlined_call_operand.vmem [shape: f32[1,64], index: 7, kind: input, shape index: {}]
  %s8 = inlined_call_operand.hbm [shape: bf16[64,128], index: 8, kind: input, shape index: {}]
  %s9 = inlined_call_operand.vmem [shape: f32[1,128], index: 9, kind: input, shape index: {}]
  %s10 = inlined_call_operand.vmem [shape: bf16[128,64], index: 10, kind: input, shape index: {}]
  %s11 = inlined_call_operand.vmem [shape: f32[1,64], index: 11, kind: input, shape index: {}]
  %s12 = inlined_call_operand.vmem [shape: f32[1,64], index: 12, kind: input, shape index: {}]
  %s13 = inlined_call_operand.vmem [shape: f32[1,64], index: 13, kind: input, shape index: {}]
  %s14 = inlined_call_operand.vmem [shape: f32[1,64], index: 14, kind: input, shape index: {}]
  %s15 = inlined_call_operand.vmem [shape: f32[1,64], index: 15, kind: input, shape index: {}]
  %s16 = inlined_call_operand.hbm [shape: f32[2,16,64], index: 16, kind: output, shape index: {0}]
  %s17 = inlined_call_operand.hbm [shape: f32[2,4,16,16], index: 17, kind: output, shape index: {1}]
  %18 = xla_tuple %s16, %s17
  %s19 = sld [smem:[#allocation0]]
  $region117: #{tpu_custom_call.1} parent=0
    _
  %s21 = ssub.s32 1, %s19
  %s22 = scalar_select 0, %s21, %s19
  $region1: #{tpu_custom_call.1} parent=0
    #allocation2 [shape = 'u8[16384]{0}', space=vmem, size = 0x4000, scoped, tag = 'input window, operand 4, single buffered']
    #allocation3 [shape = 's32[2]{0}', space=sflag, size = 0x8, scoped, tag = 'scoped memory for tpu_custom_call.1']
    #allocation4 [shape = 's32[2]{0}', space=sflag, size = 0x8, scoped, tag = 'scoped memory for tpu_custom_call.1']
    #allocation5 [shape = 'u8[16384]{0}', space=vmem, size = 0x4000, scoped, tag = 'input window, operand 6, single buffered']
    #allocation6 [shape = 's32[1]{0}', space=sflag, size = 0x4, scoped, tag = 'scoped memory for tpu_custom_call.1']
    #allocation7 [shape = 'u8[16384]{0}', space=vmem, size = 0x4000, scoped, tag = 'input window, operand 8, single buffered']
    #allocation8 [shape = 'u8[16384]{0}', space=vmem, size = 0x4000, scoped, tag = 'output window, operand 0']
    #allocation9 [shape = 'u8[65536]{0}', space=vmem, size = 0x10000, scoped, tag = 'output window, operand 1']
    #allocation10 [shape = 's32[2]{0}', space=sflag, size = 0x8, scoped, tag = 'scoped memory for tpu_custom_call.1']
    %23 = vsyncpa [#allocation3], 0
    %24 = vsyncpa [#allocation6], 0
    %25 = vsyncpa [#allocation4], 0
    %s26 = scalar_lea.sflag [#allocation4], 1
    %27 = vsyncpa %s26, 0
    %28 = vsyncpa [#allocation10], 0
    %s29 = scalar_lea.sflag [#allocation10], 1
    %30 = vsyncpa %s29, 0
    loop: start=0, step=1, limit=4
    $region2: #{tpu_custom_call.1} parent=1 // loop_pre_header
      _
    $region3: #{tpu_custom_call.1} parent=1 // loop_header
      %s32 = sphi 0, %s36
      %p33 = scmp.ge.s32.totalorder %s32, 4
      %s39 = sphi 0, %s51
      %s40 = sphi 0, %s47
      %s41 = sphi 0, %s39
      %s42 = sphi 0, %s40
      %s43 = sphi 0, %s41
      %s44 = sphi 0, %s42
      %s56 = sphi 0, %s58
      %s59 = sphi 0, %s56
      %s60 = sphi 0, %s59
      %s76 = sphi 0, %s60
      %s82 = sphi 0, %s84
      %s85 = sphi 0, %s82
      %s86 = sphi 0, %s85
      %s102 = sphi 0, %s86
      %s106 = sphi 0, %s106
      %s108 = sphi 0, %s106
      %s109 = sphi 0, %s108
      %s123 = sphi 0, %s109
      %s127 = sphi 0, %s127
      %s129 = sphi 0, %s127
      %s130 = sphi 0, %s129
      %s144 = sphi 0, %s130
      %s148 = sphi 0, %s148
      %s150 = sphi 0, %s148
      %s151 = sphi 0, %s150
      %s165 = sphi 0, %s151
      %s169 = sphi 0, %s169
      %s171 = sphi 0, %s169
      %s172 = sphi 0, %s171
      %s186 = sphi 0, %s172
      %s190 = sphi 0, %s190
      %s192 = sphi 0, %s190
      %s193 = sphi 0, %s192
      %s207 = sphi 0, %s193
      %s211 = sphi 0, %s211
      %s213 = sphi 0, %s211
      %s214 = sphi 0, %s213
      %s228 = sphi 0, %s214
      %s232 = sphi 0, %s232
      %s234 = sphi 0, %s232
      %s235 = sphi 0, %s234
      %s249 = sphi 0, %s235
      %s253 = sphi 0, %s253
      %s255 = sphi 0, %s253
      %s256 = sphi 0, %s255
      %s270 = sphi 0, %s256
      %s274 = sphi 0, %s274
      %s276 = sphi 0, %s274
      %s277 = sphi 0, %s276
      %s291 = sphi 0, %s277
      %s295 = sphi 0, %s295
      %s297 = sphi 0, %s295
      %s298 = sphi 0, %s297
      %s312 = sphi 0, %s298
      %s316 = sphi 0, %s316
      %s318 = sphi 0, %s316
      %s319 = sphi 0, %s318
      %s333 = sphi 0, %s319
      %s337 = sphi 0, %s337
      %s339 = sphi 0, %s337
      %s340 = sphi 0, %s339
      %s354 = sphi 0, %s340
      %s358 = sphi 0, %s358
      %s360 = sphi 0, %s358
      %s361 = sphi 0, %s360
      %s375 = sphi 0, %s361
      %s379 = sphi 0, %s379
      %s381 = sphi 0, %s379
      %s382 = sphi 0, %s381
      %s396 = sphi 0, %s382
      %s404 = sphi 0, %s406
      %s407 = sphi 0, %s404
      %s408 = sphi 0, %s407
      %s424 = sphi 0, %s408
      %s432 = sphi 0, %s434
      %s435 = sphi 0, %s432
      %s436 = sphi 0, %s435
      %s452 = sphi 0, %s436
    $region4: #{tpu_custom_call.1} parent=1 // loop_header_branch
      %35 = sbr.rel (%p33) target = $region8
    $region5: #{tpu_custom_call.1} parent=1 // loop_body
      %s37 = ssub.s32 %s32, 1
      %s38 = ssub.s32 %s32, 2
      %s45 = sadd.s32 1, %s40
      %p46 = scmp.ge.s32.totalorder %s45, 1
      %s47 = scalar_select %p46, 0, %s45
      %s48 = sadd.s32 1, %s39
      %s49 = scalar_select %p46, %s48, %s39
      %p50 = scmp.ge.s32.totalorder %s49, 2
      %s51 = scalar_select %p50, 0, %s49
      %s52 = ssub.s32 %s39, %s51
      %s53 = ssub.s32 %s40, %s47
      %s54 = sor.u32 %s52, %s53
      %p55 = scmp.eq.s32.totalorder %s54, 0
      %s57 = sadd.s32 %s56, 1
      %s58 = scalar_select %p55, %s56, %s57
      %p61 = pneg %p55
      %p62 = scmp.eq.s32.totalorder %s32, 1
      %p63 = por %p61, %p62
      %p64 = scmp.ne.s32.totalorder %s56, %s59
      %p65 = scmp.eq.s32.totalorder %s32, 0
      %p66 = por %p64, %p65
      %p67 = scmp.ne.s32.totalorder %s56, %s59
      %p68 = scmp.eq.s32.totalorder %s37, 1
      %p69 = por %p67, %p68
      %p70 = scmp.ne.s32.totalorder %s59, %s60
      %p71 = scmp.eq.s32.totalorder %s37, 0
      %p72 = por %p70, %p71
      %p73 = scmp.ne.s32.totalorder %s59, %s60
      %p74 = scmp.eq.s32.totalorder %s38, 1
      %p75 = por %p73, %p74
      %p77 = scmp.ne.s32.totalorder %s60, %s76
      %p78 = scmp.eq.s32.totalorder %s38, 0
      %p79 = por %p77, %p78
      %s80 = ssub.s32 %s39, %s51
      %p81 = scmp.eq.s32.totalorder %s80, 0
      %s83 = sadd.s32 %s82, 1
      %s84 = scalar_select %p81, %s82, %s83
      %p87 = pneg %p81
      %p88 = scmp.eq.s32.totalorder %s32, 1
      %p89 = por %p87, %p88
      %p90 = scmp.ne.s32.totalorder %s82, %s85
      %p91 = scmp.eq.s32.totalorder %s32, 0
      %p92 = por %p90, %p91
      %p93 = scmp.ne.s32.totalorder %s82, %s85
      %p94 = scmp.eq.s32.totalorder %s37, 1
      %p95 = por %p93, %p94
      %p96 = scmp.ne.s32.totalorder %s85, %s86
      %p97 = scmp.eq.s32.totalorder %s37, 0
      %p98 = por %p96, %p97
      %p99 = scmp.ne.s32.totalorder %s85, %s86
      %p100 = scmp.eq.s32.totalorder %s38, 1
      %p101 = por %p99, %p100
      %p103 = scmp.ne.s32.totalorder %s86, %s102
      %p104 = scmp.eq.s32.totalorder %s38, 0
      %p105 = por %p103, %p104
      %s107 = sadd.s32 %s106, 1
      %p110 = scmp.eq.s32.totalorder %s32, 1
      %p111 = scmp.ne.s32.totalorder %s106, %s108
      %p112 = scmp.eq.s32.totalorder %s32, 0
      %p113 = por %p111, %p112
      %p114 = scmp.ne.s32.totalorder %s106, %s108
      %p115 = scmp.eq.s32.totalorder %s37, 1
      %p116 = por %p114, %p115
      %p117 = scmp.ne.s32.totalorder %s108, %s109
      %p118 = scmp.eq.s32.totalorder %s37, 0
      %p119 = por %p117, %p118
      %p120 = scmp.ne.s32.totalorder %s108, %s109
      %p121 = scmp.eq.s32.totalorder %s38, 1
      %p122 = por %p120, %p121
      %p124 = scmp.ne.s32.totalorder %s109, %s123
      %p125 = scmp.eq.s32.totalorder %s38, 0
      %p126 = por %p124, %p125
      %s128 = sadd.s32 %s127, 1
      %p131 = scmp.eq.s32.totalorder %s32, 1
      %p132 = scmp.ne.s32.totalorder %s127, %s129
      %p133 = scmp.eq.s32.totalorder %s32, 0
      %p134 = por %p132, %p133
      %p135 = scmp.ne.s32.totalorder %s127, %s129
      %p136 = scmp.eq.s32.totalorder %s37, 1
      %p137 = por %p135, %p136
      %p138 = scmp.ne.s32.totalorder %s129, %s130
      %p139 = scmp.eq.s32.totalorder %s37, 0
      %p140 = por %p138, %p139
      %p141 = scmp.ne.s32.totalorder %s129, %s130
      %p142 = scmp.eq.s32.totalorder %s38, 1
      %p143 = por %p141, %p142
      %p145 = scmp.ne.s32.totalorder %s130, %s144
      %p146 = scmp.eq.s32.totalorder %s38, 0
      %p147 = por %p145, %p146
      %s149 = sadd.s32 %s148, 1
      %p152 = scmp.eq.s32.totalorder %s32, 1
      %p153 = scmp.ne.s32.totalorder %s148, %s150
      %p154 = scmp.eq.s32.totalorder %s32, 0
      %p155 = por %p153, %p154
      %p156 = scmp.ne.s32.totalorder %s148, %s150
      %p157 = scmp.eq.s32.totalorder %s37, 1
      %p158 = por %p156, %p157
      %p159 = scmp.ne.s32.totalorder %s150, %s151
      %p160 = scmp.eq.s32.totalorder %s37, 0
      %p161 = por %p159, %p160
      %p162 = scmp.ne.s32.totalorder %s150, %s151
      %p163 = scmp.eq.s32.totalorder %s38, 1
      %p164 = por %p162, %p163
      %p166 = scmp.ne.s32.totalorder %s151, %s165
      %p167 = scmp.eq.s32.totalorder %s38, 0
      %p168 = por %p166, %p167
      %s170 = sadd.s32 %s169, 1
      %p173 = scmp.eq.s32.totalorder %s32, 1
      %p174 = scmp.ne.s32.totalorder %s169, %s171
      %p175 = scmp.eq.s32.totalorder %s32, 0
      %p176 = por %p174, %p175
      %p177 = scmp.ne.s32.totalorder %s169, %s171
      %p178 = scmp.eq.s32.totalorder %s37, 1
      %p179 = por %p177, %p178
      %p180 = scmp.ne.s32.totalorder %s171, %s172
      %p181 = scmp.eq.s32.totalorder %s37, 0
      %p182 = por %p180, %p181
      %p183 = scmp.ne.s32.totalorder %s171, %s172
      %p184 = scmp.eq.s32.totalorder %s38, 1
      %p185 = por %p183, %p184
      %p187 = scmp.ne.s32.totalorder %s172, %s186
      %p188 = scmp.eq.s32.totalorder %s38, 0
      %p189 = por %p187, %p188
      %s191 = sadd.s32 %s190, 1
      %p194 = scmp.eq.s32.totalorder %s32, 1
      %p195 = scmp.ne.s32.totalorder %s190, %s192
      %p196 = scmp.eq.s32.totalorder %s32, 0
      %p197 = por %p195, %p196
      %p198 = scmp.ne.s32.totalorder %s190, %s192
      %p199 = scmp.eq.s32.totalorder %s37, 1
      %p200 = por %p198, %p199
      %p201 = scmp.ne.s32.totalorder %s192, %s193
      %p202 = scmp.eq.s32.totalorder %s37, 0
      %p203 = por %p201, %p202
      %p204 = scmp.ne.s32.totalorder %s192, %s193
      %p205 = scmp.eq.s32.totalorder %s38, 1
      %p206 = por %p204, %p205
      %p208 = scmp.ne.s32.totalorder %s193, %s207
      %p209 = scmp.eq.s32.totalorder %s38, 0
      %p210 = por %p208, %p209
      %s212 = sadd.s32 %s211, 1
      %p215 = scmp.eq.s32.totalorder %s32, 1
      %p216 = scmp.ne.s32.totalorder %s211, %s213
      %p217 = scmp.eq.s32.totalorder %s32, 0
      %p218 = por %p216, %p217
      %p219 = scmp.ne.s32.totalorder %s211, %s213
      %p220 = scmp.eq.s32.totalorder %s37, 1
      %p221 = por %p219, %p220
      %p222 = scmp.ne.s32.totalorder %s213, %s214
      %p223 = scmp.eq.s32.totalorder %s37, 0
      %p224 = por %p222, %p223
      %p225 = scmp.ne.s32.totalorder %s213, %s214
      %p226 = scmp.eq.s32.totalorder %s38, 1
      %p227 = por %p225, %p226
      %p229 = scmp.ne.s32.totalorder %s214, %s228
      %p230 = scmp.eq.s32.totalorder %s38, 0
      %p231 = por %p229, %p230
      %s233 = sadd.s32 %s232, 1
      %p236 = scmp.eq.s32.totalorder %s32, 1
      %p237 = scmp.ne.s32.totalorder %s232, %s234
      %p238 = scmp.eq.s32.totalorder %s32, 0
      %p239 = por %p237, %p238
      %p240 = scmp.ne.s32.totalorder %s232, %s234
      %p241 = scmp.eq.s32.totalorder %s37, 1
      %p242 = por %p240, %p241
      %p243 = scmp.ne.s32.totalorder %s234, %s235
      %p244 = scmp.eq.s32.totalorder %s37, 0
      %p245 = por %p243, %p244
      %p246 = scmp.ne.s32.totalorder %s234, %s235
      %p247 = scmp.eq.s32.totalorder %s38, 1
      %p248 = por %p246, %p247
      %p250 = scmp.ne.s32.totalorder %s235, %s249
      %p251 = scmp.eq.s32.totalorder %s38, 0
      %p252 = por %p250, %p251
      %s254 = sadd.s32 %s253, 1
      %p257 = scmp.eq.s32.totalorder %s32, 1
      %p258 = scmp.ne.s32.totalorder %s253, %s255
      %p259 = scmp.eq.s32.totalorder %s32, 0
      %p260 = por %p258, %p259
      %p261 = scmp.ne.s32.totalorder %s253, %s255
      %p262 = scmp.eq.s32.totalorder %s37, 1
      %p263 = por %p261, %p262
      %p264 = scmp.ne.s32.totalorder %s255, %s256
      %p265 = scmp.eq.s32.totalorder %s37, 0
      %p266 = por %p264, %p265
      %p267 = scmp.ne.s32.totalorder %s255, %s256
      %p268 = scmp.eq.s32.totalorder %s38, 1
      %p269 = por %p267, %p268
      %p271 = scmp.ne.s32.totalorder %s256, %s270
      %p272 = scmp.eq.s32.totalorder %s38, 0
      %p273 = por %p271, %p272
      %s275 = sadd.s32 %s274, 1
      %p278 = scmp.eq.s32.totalorder %s32, 1
      %p279 = scmp.ne.s32.totalorder %s274, %s276
      %p280 = scmp.eq.s32.totalorder %s32, 0
      %p281 = por %p279, %p280
      %p282 = scmp.ne.s32.totalorder %s274, %s276
      %p283 = scmp.eq.s32.totalorder %s37, 1
      %p284 = por %p282, %p283
      %p285 = scmp.ne.s32.totalorder %s276, %s277
      %p286 = scmp.eq.s32.totalorder %s37, 0
      %p287 = por %p285, %p286
      %p288 = scmp.ne.s32.totalorder %s276, %s277
      %p289 = scmp.eq.s32.totalorder %s38, 1
      %p290 = por %p288, %p289
      %p292 = scmp.ne.s32.totalorder %s277, %s291
      %p293 = scmp.eq.s32.totalorder %s38, 0
      %p294 = por %p292, %p293
      %s296 = sadd.s32 %s295, 1
      %p299 = scmp.eq.s32.totalorder %s32, 1
      %p300 = scmp.ne.s32.totalorder %s295, %s297
      %p301 = scmp.eq.s32.totalorder %s32, 0
      %p302 = por %p300, %p301
      %p303 = scmp.ne.s32.totalorder %s295, %s297
      %p304 = scmp.eq.s32.totalorder %s37, 1
      %p305 = por %p303, %p304
      %p306 = scmp.ne.s32.totalorder %s297, %s298
      %p307 = scmp.eq.s32.totalorder %s37, 0
      %p308 = por %p306, %p307
      %p309 = scmp.ne.s32.totalorder %s297, %s298
      %p310 = scmp.eq.s32.totalorder %s38, 1
      %p311 = por %p309, %p310
      %p313 = scmp.ne.s32.totalorder %s298, %s312
      %p314 = scmp.eq.s32.totalorder %s38, 0
      %p315 = por %p313, %p314
      %s317 = sadd.s32 %s316, 1
      %p320 = scmp.eq.s32.totalorder %s32, 1
      %p321 = scmp.ne.s32.totalorder %s316, %s318
      %p322 = scmp.eq.s32.totalorder %s32, 0
      %p323 = por %p321, %p322
      %p324 = scmp.ne.s32.totalorder %s316, %s318
      %p325 = scmp.eq.s32.totalorder %s37, 1
      %p326 = por %p324, %p325
      %p327 = scmp.ne.s32.totalorder %s318, %s319
      %p328 = scmp.eq.s32.totalorder %s37, 0
      %p329 = por %p327, %p328
      %p330 = scmp.ne.s32.totalorder %s318, %s319
      %p331 = scmp.eq.s32.totalorder %s38, 1
      %p332 = por %p330, %p331
      %p334 = scmp.ne.s32.totalorder %s319, %s333
      %p335 = scmp.eq.s32.totalorder %s38, 0
      %p336 = por %p334, %p335
      %s338 = sadd.s32 %s337, 1
      %p341 = scmp.eq.s32.totalorder %s32, 1
      %p342 = scmp.ne.s32.totalorder %s337, %s339
      %p343 = scmp.eq.s32.totalorder %s32, 0
      %p344 = por %p342, %p343
      %p345 = scmp.ne.s32.totalorder %s337, %s339
      %p346 = scmp.eq.s32.totalorder %s37, 1
      %p347 = por %p345, %p346
      %p348 = scmp.ne.s32.totalorder %s339, %s340
      %p349 = scmp.eq.s32.totalorder %s37, 0
      %p350 = por %p348, %p349
      %p351 = scmp.ne.s32.totalorder %s339, %s340
      %p352 = scmp.eq.s32.totalorder %s38, 1
      %p353 = por %p351, %p352
      %p355 = scmp.ne.s32.totalorder %s340, %s354
      %p356 = scmp.eq.s32.totalorder %s38, 0
      %p357 = por %p355, %p356
      %s359 = sadd.s32 %s358, 1
      %p362 = scmp.eq.s32.totalorder %s32, 1
      %p363 = scmp.ne.s32.totalorder %s358, %s360
      %p364 = scmp.eq.s32.totalorder %s32, 0
      %p365 = por %p363, %p364
      %p366 = scmp.ne.s32.totalorder %s358, %s360
      %p367 = scmp.eq.s32.totalorder %s37, 1
      %p368 = por %p366, %p367
      %p369 = scmp.ne.s32.totalorder %s360, %s361
      %p370 = scmp.eq.s32.totalorder %s37, 0
      %p371 = por %p369, %p370
      %p372 = scmp.ne.s32.totalorder %s360, %s361
      %p373 = scmp.eq.s32.totalorder %s38, 1
      %p374 = por %p372, %p373
      %p376 = scmp.ne.s32.totalorder %s361, %s375
      %p377 = scmp.eq.s32.totalorder %s38, 0
      %p378 = por %p376, %p377
      %s380 = sadd.s32 %s379, 1
      %p383 = scmp.eq.s32.totalorder %s32, 1
      %p384 = scmp.ne.s32.totalorder %s379, %s381
      %p385 = scmp.eq.s32.totalorder %s32, 0
      %p386 = por %p384, %p385
      %p387 = scmp.ne.s32.totalorder %s379, %s381
      %p388 = scmp.eq.s32.totalorder %s37, 1
      %p389 = por %p387, %p388
      %p390 = scmp.ne.s32.totalorder %s381, %s382
      %p391 = scmp.eq.s32.totalorder %s37, 0
      %p392 = por %p390, %p391
      %p393 = scmp.ne.s32.totalorder %s381, %s382
      %p394 = scmp.eq.s32.totalorder %s38, 1
      %p395 = por %p393, %p394
      %p397 = scmp.ne.s32.totalorder %s382, %s396
      %p398 = scmp.eq.s32.totalorder %s38, 0
      %p399 = por %p397, %p398
      %s400 = ssub.s32 %s39, %s51
      %s401 = ssub.s32 %s40, %s47
      %s402 = sor.u32 %s400, %s401
      %p403 = scmp.eq.s32.totalorder %s402, 0
      %s405 = sadd.s32 %s404, 1
      %s406 = scalar_select %p403, %s404, %s405
      %p409 = pneg %p403
      %p410 = scmp.eq.s32.totalorder %s32, 1
      %p411 = por %p409, %p410
      %p412 = scmp.ne.s32.totalorder %s404, %s407
      %p413 = scmp.eq.s32.totalorder %s32, 0
      %p414 = por %p412, %p413
      %p415 = scmp.ne.s32.totalorder %s404, %s407
      %p416 = scmp.eq.s32.totalorder %s37, 1
      %p417 = por %p415, %p416
      %p418 = scmp.ne.s32.totalorder %s407, %s408
      %p419 = scmp.eq.s32.totalorder %s37, 0
      %p420 = por %p418, %p419
      %p421 = scmp.ne.s32.totalorder %s407, %s408
      %p422 = scmp.eq.s32.totalorder %s38, 1
      %p423 = por %p421, %p422
      %p425 = scmp.ne.s32.totalorder %s408, %s424
      %p426 = scmp.eq.s32.totalorder %s38, 0
      %p427 = por %p425, %p426
      %s428 = ssub.s32 %s39, %s51
      %s429 = ssub.s32 %s40, %s47
      %s430 = sor.u32 %s428, %s429
      %p431 = scmp.eq.s32.totalorder %s430, 0
      %s433 = sadd.s32 %s432, 1
      %s434 = scalar_select %p431, %s432, %s433
      %p437 = pneg %p431
      %p438 = scmp.eq.s32.totalorder %s32, 1
      %p439 = por %p437, %p438
      %p440 = scmp.ne.s32.totalorder %s432, %s435
      %p441 = scmp.eq.s32.totalorder %s32, 0
      %p442 = por %p440, %p441
      %p443 = scmp.ne.s32.totalorder %s432, %s435
      %p444 = scmp.eq.s32.totalorder %s37, 1
      %p445 = por %p443, %p444
      %p446 = scmp.ne.s32.totalorder %s435, %s436
      %p447 = scmp.eq.s32.totalorder %s37, 0
      %p448 = por %p446, %p447
      %p449 = scmp.ne.s32.totalorder %s435, %s436
      %p450 = scmp.eq.s32.totalorder %s38, 1
      %p451 = por %p449, %p450
      %p453 = scmp.ne.s32.totalorder %s436, %s452
      %p454 = scmp.eq.s32.totalorder %s38, 0
      %p455 = por %p453, %p454
      %p456 = scmp.le.s32.totalorder 1, %s32
      %p457 = scmp.lt.s32.totalorder %s32, 3
      %p458 = pnand %p456, %p457
      %p459 = pneg %p458
      // Predicated region
      $region9: #{tpu_custom_call.1} parent=5 // pred_check
        _
      $region10: #{tpu_custom_call.1} parent=5 // pred_check_branch
        %461 = sbr.rel (%p458) target = $region12
      $region11: #{tpu_custom_call.1} parent=5 // pred_region
        %s462 = ssub.s32 %s32, 1
        // Predicated region
        $region13: #{tpu_custom_call.1} parent=11 // pred_check
          %p463 = pneg %p119
        $region14: #{tpu_custom_call.1} parent=11 // pred_check_branch
          %465 = sbr.rel (%p463) target = $region16
        $region15: #{tpu_custom_call.1} parent=11 // pred_region
          _
        $region16: #{tpu_custom_call.1} parent=11 // pred_fallthru
          _
        // Predicated region
        $region17: #{tpu_custom_call.1} parent=11 // pred_check
          %p466 = pneg %p140
        $region18: #{tpu_custom_call.1} parent=11 // pred_check_branch
          %468 = sbr.rel (%p466) target = $region20
        $region19: #{tpu_custom_call.1} parent=11 // pred_region
          _
        $region20: #{tpu_custom_call.1} parent=11 // pred_fallthru
          _
        // Predicated region
        $region21: #{tpu_custom_call.1} parent=11 // pred_check
          %p469 = pneg %p161
        $region22: #{tpu_custom_call.1} parent=11 // pred_check_branch
          %471 = sbr.rel (%p469) target = $region24
        $region23: #{tpu_custom_call.1} parent=11 // pred_region
          %s473 = ssub.s32 512, 512
          %474 = vsyncadd [#allocation3], %s473
          %s475 = sshll.u32 [#allocation2], 4
          %s476 = int_to_ptr.vmem [resolvable:$true] %s475
          %481 = dma.hbm_to_vmem [thread:$0]  %s4, 512, %s476, [#allocation3], 64, 64, 4
        $region24: #{tpu_custom_call.1} parent=11 // pred_fallthru
          _
        // Predicated region
        $region25: #{tpu_custom_call.1} parent=11 // pred_check
          %p482 = pneg %p182
        $region26: #{tpu_custom_call.1} parent=11 // pred_check_branch
          %484 = sbr.rel (%p482) target = $region28
        $region27: #{tpu_custom_call.1} parent=11 // pred_region
          _
        $region28: #{tpu_custom_call.1} parent=11 // pred_fallthru
          _
        // Predicated region
        $region29: #{tpu_custom_call.1} parent=11 // pred_check
          %p485 = pneg %p203
        $region30: #{tpu_custom_call.1} parent=11 // pred_check_branch
          %487 = sbr.rel (%p485) target = $region32
        $region31: #{tpu_custom_call.1} parent=11 // pred_region
          %s489 = ssub.s32 512, 512
          %490 = vsyncadd [#allocation6], %s489
          %s491 = sshll.u32 [#allocation5], 4
          %s492 = int_to_ptr.vmem [resolvable:$true] %s491
          %497 = dma.hbm_to_vmem [thread:$0]  %s6, 512, %s492, [#allocation6], 64, 64, 4
        $region32: #{tpu_custom_call.1} parent=11 // pred_fallthru
          _
        // Predicated region
        $region33: #{tpu_custom_call.1} parent=11 // pred_check
          %p498 = pneg %p224
        $region34: #{tpu_custom_call.1} parent=11 // pred_check_branch
          %500 = sbr.rel (%p498) target = $region36
        $region35: #{tpu_custom_call.1} parent=11 // pred_region
          _
        $region36: #{tpu_custom_call.1} parent=11 // pred_fallthru
          _
        // Predicated region
        $region37: #{tpu_custom_call.1} parent=11 // pred_check
          %p501 = pneg %p245
        $region38: #{tpu_custom_call.1} parent=11 // pred_check_branch
          %503 = sbr.rel (%p501) target = $region40
        $region39: #{tpu_custom_call.1} parent=11 // pred_region
          %s505 = ssub.s32 512, 512
          %506 = vsyncadd [#allocation6], %s505
          %s507 = sshll.u32 [#allocation7], 4
          %s508 = int_to_ptr.vmem [resolvable:$true] %s507
          %513 = dma.hbm_to_vmem [thread:$0]  %s8, 512, %s508, [#allocation6], 64, 64, 4
        $region40: #{tpu_custom_call.1} parent=11 // pred_fallthru
          _
        // Predicated region
        $region41: #{tpu_custom_call.1} parent=11 // pred_check
          %p514 = pneg %p266
        $region42: #{tpu_custom_call.1} parent=11 // pred_check_branch
          %516 = sbr.rel (%p514) target = $region44
        $region43: #{tpu_custom_call.1} parent=11 // pred_region
          _
        $region44: #{tpu_custom_call.1} parent=11 // pred_fallthru
          _
        // Predicated region
        $region45: #{tpu_custom_call.1} parent=11 // pred_check
          %p517 = pneg %p287
        $region46: #{tpu_custom_call.1} parent=11 // pred_check_branch
          %519 = sbr.rel (%p517) target = $region48
        $region47: #{tpu_custom_call.1} parent=11 // pred_region
          _
        $region48: #{tpu_custom_call.1} parent=11 // pred_fallthru
          _
        // Predicated region
        $region49: #{tpu_custom_call.1} parent=11 // pred_check
          %p520 = pneg %p308
        $region50: #{tpu_custom_call.1} parent=11 // pred_check_branch
          %522 = sbr.rel (%p520) target = $region52
        $region51: #{tpu_custom_call.1} parent=11 // pred_region
          _
        $region52: #{tpu_custom_call.1} parent=11 // pred_fallthru
          _
        // Predicated region
        $region53: #{tpu_custom_call.1} parent=11 // pred_check
          %p523 = pneg %p329
        $region54: #{tpu_custom_call.1} parent=11 // pred_check_branch
          %525 = sbr.rel (%p523) target = $region56
        $region55: #{tpu_custom_call.1} parent=11 // pred_region
          _
        $region56: #{tpu_custom_call.1} parent=11 // pred_fallthru
          _
        // Predicated region
        $region57: #{tpu_custom_call.1} parent=11 // pred_check
          %p526 = pneg %p350
        $region58: #{tpu_custom_call.1} parent=11 // pred_check_branch
          %528 = sbr.rel (%p526) target = $region60
        $region59: #{tpu_custom_call.1} parent=11 // pred_region
          _
        $region60: #{tpu_custom_call.1} parent=11 // pred_fallthru
          _
        // Predicated region
        $region61: #{tpu_custom_call.1} parent=11 // pred_check
          %p529 = pneg %p371
        $region62: #{tpu_custom_call.1} parent=11 // pred_check_branch
          %531 = sbr.rel (%p529) target = $region64
        $region63: #{tpu_custom_call.1} parent=11 // pred_region
          _
        $region64: #{tpu_custom_call.1} parent=11 // pred_fallthru
          _
        // Predicated region
        $region65: #{tpu_custom_call.1} parent=11 // pred_check
          %p532 = pneg %p392
        $region66: #{tpu_custom_call.1} parent=11 // pred_check_branch
          %534 = sbr.rel (%p532) target = $region68
        $region67: #{tpu_custom_call.1} parent=11 // pred_region
          _
        $region68: #{tpu_custom_call.1} parent=11 // pred_fallthru
          _
      $region12: #{tpu_custom_call.1} parent=5 // pred_fallthru
        _
      %p535 = scmp.lt.s32.totalorder %s32, 2
      // Predicated region
      $region69: #{tpu_custom_call.1} parent=5 // pred_check
        %p536 = pneg %p535
      $region70: #{tpu_custom_call.1} parent=5 // pred_check_branch
        %538 = sbr.rel (%p536) target = $region72
      $region71: #{tpu_custom_call.1} parent=5 // pred_region
        // Predicated region
        $region73: #{tpu_custom_call.1} parent=71 // pred_check
          %p539 = pneg %p66
        $region74: #{tpu_custom_call.1} parent=71 // pred_check_branch
          %541 = sbr.rel (%p539) target = $region76
        $region75: #{tpu_custom_call.1} parent=71 // pred_region
          %s542 = smul.u32 2, %s40
          %p543 = scmp.lt.s32.totalorder %s39, 1
          %s544 = scalar_select %p543, %s39, 1
          %p545 = scmp.lt.s32.totalorder %s542, 1
          %s546 = scalar_select %p545, %s542, 1
          %s547 = smul.addr %s544, 2
          %s548 = sadd.s32 %s546, %s547
          %s549 = smul.addr %s548, 8
          %s550 = scalar_lea.vmem %s0, %s549
          %s551 = smul.u32 2, %s40
        $region76: #{tpu_custom_call.1} parent=71 // pred_fallthru
          _
        // Predicated region
        $region77: #{tpu_custom_call.1} parent=71 // pred_check
          %p552 = pneg %p92
        $region78: #{tpu_custom_call.1} parent=71 // pred_check_branch
          %554 = sbr.rel (%p552) target = $region80
        $region79: #{tpu_custom_call.1} parent=71 // pred_region
          %p555 = scmp.lt.s32.totalorder %s39, 1
          %s556 = scalar_select %p555, %s39, 1
          %s557 = smul.addr %s556, 2
          %s558 = smul.addr %s557, 8
          %s559 = scalar_lea.vmem %s1, %s558
        $region80: #{tpu_custom_call.1} parent=71 // pred_fallthru
          _
      $region72: #{tpu_custom_call.1} parent=5 // pred_fallthru
        _
      %p560 = scmp.le.s32.totalorder 1, %s32
      %p561 = scmp.lt.s32.totalorder %s32, 3
      %p562 = pnand %p560, %p561
      %p563 = pneg %p562
      // Predicated region
      $region81: #{tpu_custom_call.1} parent=5 // pred_check
        _
      $region82: #{tpu_custom_call.1} parent=5 // pred_check_branch
        %565 = sbr.rel (%p562) target = $region84
      $region83: #{tpu_custom_call.1} parent=5 // pred_region
        %s566 = ssub.s32 %s32, 1
        // Predicated region
        $region85: #{tpu_custom_call.1} parent=83 // pred_check
          %p567 = pneg %p161
        $region86: #{tpu_custom_call.1} parent=83 // pred_check_branch
          %569 = sbr.rel (%p567) target = $region88
        $region87: #{tpu_custom_call.1} parent=83 // pred_region
          %570 = dma.done [#allocation3], 512
        $region88: #{tpu_custom_call.1} parent=83 // pred_fallthru
          _
        // Predicated region
        $region89: #{tpu_custom_call.1} parent=83 // pred_check
          %p571 = pneg %p203
        $region90: #{tpu_custom_call.1} parent=83 // pred_check_branch
          %573 = sbr.rel (%p571) target = $region92
        $region91: #{tpu_custom_call.1} parent=83 // pred_region
          %574 = dma.done [#allocation6], 512
        $region92: #{tpu_custom_call.1} parent=83 // pred_fallthru
          _
        // Predicated region
        $region93: #{tpu_custom_call.1} parent=83 // pred_check
          %p575 = pneg %p245
        $region94: #{tpu_custom_call.1} parent=83 // pred_check_branch
          %577 = sbr.rel (%p575) target = $region96
        $region95: #{tpu_custom_call.1} parent=83 // pred_region
          %578 = dma.done [#allocation6], 512
        $region96: #{tpu_custom_call.1} parent=83 // pred_fallthru
          _
        %s579 = smul.u32 2, %s42
        %p580 = scmp.lt.s32.totalorder %s41, 1
        %s581 = scalar_select %p580, %s41, 1
        %p582 = scmp.lt.s32.totalorder %s579, 1
        %s583 = scalar_select %p582, %s579, 1
        %s584 = smul.addr %s581, 2
        %s585 = sadd.s32 %s583, %s584
        %s586 = smul.addr %s585, 8
        %s587 = scalar_lea.vmem %s0, %s586
        %p588 = pneg %p72
        %p589 = pneg %p69
        %p590 = scmp.lt.s32.totalorder %s41, 1
        %s591 = scalar_select %p590, %s41, 1
        %s592 = smul.addr %s591, 2
        %s593 = smul.addr %s592, 8
        %s594 = scalar_lea.vmem %s1, %s593
        %p595 = pneg %p98
        %p596 = pneg %p95
        %p597 = pneg %p119
        %p598 = pneg %p116
        %p599 = pneg %p140
        %p600 = pneg %p137
        %p601 = pneg %p161
        %p602 = pneg %p158
        %p603 = pneg %p182
        %p604 = pneg %p179
        %p605 = pneg %p203
        %p606 = pneg %p200
        %p607 = pneg %p224
        %p608 = pneg %p221
        %p609 = pneg %p245
        %p610 = pneg %p242
        %p611 = pneg %p266
        %p612 = pneg %p263
        %p613 = pneg %p287
        %p614 = pneg %p284
        %p615 = pneg %p308
        %p616 = pneg %p305
        %p617 = pneg %p329
        %p618 = pneg %p326
        %p619 = pneg %p350
        %p620 = pneg %p347
        %p621 = pneg %p371
        %p622 = pneg %p368
        %p623 = pneg %p392
        %p624 = pneg %p389
        %p625 = pneg %p420
        %p626 = pneg %p417
        %s627 = sand.u32 %s407, 1
        %s628 = scalar_lea.sflag [#allocation4], %s627
        %s629 = sand.u32 %s407, 1
        %s630 = smul.addr %s629, 16
        %s631 = scalar_lea.vmem [#allocation8], %s630
        %p632 = pneg %p448
        %p633 = pneg %p445
        %s634 = sand.u32 %s435, 1
        %s635 = scalar_lea.sflag [#allocation10], %s634
        %s636 = sand.u32 %s435, 1
        %s637 = smul.addr %s636, 64
        %s638 = scalar_lea.vmem [#allocation9], %s637
        %s639 = smul.u32 2, %s42
        %p640 = scmp.lt.s32.totalorder %s41, 1
        %s641 = scalar_select %p640, %s41, 1
        %p642 = scmp.lt.s32.totalorder %s639, 1
        %s643 = scalar_select %p642, %s639, 1
        %s644 = smul.addr %s641, 2
        %s645 = sadd.s32 %s643, %s644
        %s646 = smul.addr %s645, 8
        %s647 = scalar_lea.vmem %s0, %s646
        %s648 = smul.u32 2, %s42
        %p649 = scmp.lt.s32.totalorder %s41, 1
        %s650 = scalar_select %p649, %s41, 1
        %s651 = smul.addr %s650, 2
        %s652 = smul.addr %s651, 8
        %s653 = scalar_lea.vmem %s1, %s652
        %s654 = smul.u32 2, %s42
        %s655 = smul.u32 2, %s42
        %v657 = vld [vmem:[%s647] sm:$0xff]
        %v658 = vld [vmem:[%s647 + $0x8] sm:$0xff]
        %v659 = vld [vmem:[%s653] sm:$0xff]
        %v660 = vld [vmem:[%s653 + $0x8] sm:$0xff]
        %v661 = vpack.c.bf16 %v658, %v657
        %v662 = vld [vmem:[%s2] sm:$0xf]
        %v663 = vld [vmem:[%s2 + $0x4] sm:$0xf]
        %v664 = vld [vmem:[%s2 + $0x8] sm:$0xf]
        %v665 = vld [vmem:[%s2 + $0xc] sm:$0xf]
        %v666 = vld [vmem:[%s2 + $0x10] sm:$0xf]
        %v667 = vld [vmem:[%s2 + $0x14] sm:$0xf]
        %v668 = vld [vmem:[%s2 + $0x18] sm:$0xf]
        %v669 = vld [vmem:[%s2 + $0x1c] sm:$0xf]
        %v670 = vld [vmem:[%s3] sm:$0x1]
        %v672 = vlaneseq
        %v673 = vshrl.u32 %v672, 7
        %v674 = vsub.s32 0, %v673
        %v675 = vrot.slane %v670, %v674
        %v685 = vunpack.c.l.b16 %v662
        %v686 = vunpack.c.l.b16 %v663
        %v687 = vunpack.c.l.b16 %v664
        %v688 = vunpack.c.l.b16 %v665
        %v689 = vunpack.c.l.b16 %v666
        %v690 = vunpack.c.l.b16 %v667
        %v691 = vunpack.c.l.b16 %v668
        %v692 = vunpack.c.l.b16 %v669
        %v693 = vpack.c.b16 %v686, %v685
        %v694 = vpack.c.b16 %v688, %v687
        %v695 = vpack.c.b16 %v690, %v689
        %v696 = vpack.c.b16 %v692, %v691
        %vm701 = vcmask 523264
        %v703 = vsel %vm701, %v661, 0
        %705 = vmatprep.subr.bf16.mxu0 0
        %706 = vmatpush1.bf16.msra.mxu0 0
        %707 = vmatprep.subr.bf16.mxu0 0
        %708 = vmatpush1.bf16.msra.mxu0 0
        %709 = vmatprep.subr.bf16.mxu0 0
        %710 = vmatpush1.bf16.msra.mxu0 0
        %711 = vmatprep.subr.bf16.mxu0 0
        %712 = vmatpush1.bf16.msra.mxu0 0
        %713 = vmatprep.subr.bf16.mxu0 0
        %714 = vmatpush1.bf16.msra.mxu0 %v696
        %715 = vmatprep.subr.bf16.mxu0 0
        %716 = vmatpush1.bf16.msra.mxu0 %v695
        %717 = vmatprep.subr.bf16.mxu0 0
        %718 = vmatpush1.bf16.msra.mxu0 %v694
        %719 = vmatprep.subr.bf16.mxu0 0
        %720 = vmatpush1.bf16.msra.mxu0 %v693
        %721 = vmatprep.subr.bf16.mxu0 0
        %722 = vmatpush2.bf16.msra.mxu0 0
        %723 = vmatprep.subr.bf16.mxu0 0
        %724 = vmatpush2.bf16.msra.mxu0 0
        %725 = vmatprep.subr.bf16.mxu0 0
        %726 = vmatpush2.bf16.msra.mxu0 0
        %727 = vmatprep.subr.bf16.mxu0 0
        %728 = vmatpush2.bf16.msra.mxu0 0
        %729 = vmatprep.subr.bf16.mxu0 0
        %730 = vmatpush2.bf16.msra.mxu0 0
        %731 = vmatprep.subr.bf16.mxu0 0
        %732 = vmatpush2.bf16.msra.mxu0 0
        %733 = vmatprep.subr.bf16.mxu0 0
        %734 = vmatpush2.bf16.msra.mxu0 0
        %735 = vmatprep.subr.bf16.mxu0 0
        %736 = vmatpush2.bf16.msra.mxu0 0
        %737 = vmatprep.mubr.bf16.mxu0 0
        %738 = vmatmul.mubr.bf16.gmra.mxu0 %v703
        %v739 = vpop.f32.mrf.mxu0
        %v740 = vadd.f32 %v675, %v739
        %v741 = vpop.f32.mrf.mxu0
        %v742 = vpop.f32.mrf.mxu0
        %v743 = vadd.f32 %v675, %v742
        %v744 = vpop.f32.mrf.mxu0
        %745 = vdwg.mxu0
        %v746 = vpack.c.bf16 %v660, %v659
        %v747 = vld [vmem:[#allocation2] sm:$0xf]
        %v748 = vld [vmem:[#allocation2 + $0x4] sm:$0xf]
        %v749 = vld [vmem:[#allocation2 + $0x8] sm:$0xf]
        %v750 = vld [vmem:[#allocation2 + $0xc] sm:$0xf]
        %v751 = vld [vmem:[#allocation2 + $0x10] sm:$0xf]
        %v752 = vld [vmem:[#allocation2 + $0x14] sm:$0xf]
        %v753 = vld [vmem:[#allocation2 + $0x18] sm:$0xf]
        %v754 = vld [vmem:[#allocation2 + $0x1c] sm:$0xf]
        %v755 = vld [vmem:[%s5] sm:$0x1]
        %v757 = vlaneseq
        %v758 = vshrl.u32 %v757, 7
        %v759 = vsub.s32 0, %v758
        %v760 = vrot.slane %v755, %v759
        %v770 = vunpack.c.l.b16 %v747
        %v771 = vunpack.c.l.b16 %v748
        %v772 = vunpack.c.l.b16 %v749
        %v773 = vunpack.c.l.b16 %v750
        %v774 = vunpack.c.l.b16 %v751
        %v775 = vunpack.c.l.b16 %v752
        %v776 = vunpack.c.l.b16 %v753
        %v777 = vunpack.c.l.b16 %v754
        %v778 = vpack.c.b16 %v771, %v770
        %v779 = vpack.c.b16 %v773, %v772
        %v780 = vpack.c.b16 %v775, %v774
        %v781 = vpack.c.b16 %v777, %v776
        %v787 = vsel %vm701, %v746, 0
        %789 = vmatprep.subr.bf16.mxu0 0
        %790 = vmatpush1.bf16.msra.mxu0 0
        %791 = vmatprep.subr.bf16.mxu0 0
        %792 = vmatpush1.bf16.msra.mxu0 0
        %793 = vmatprep.subr.bf16.mxu0 0
        %794 = vmatpush1.bf16.msra.mxu0 0
        %795 = vmatprep.subr.bf16.mxu0 0
        %796 = vmatpush1.bf16.msra.mxu0 0
        %797 = vmatprep.subr.bf16.mxu0 0
        %798 = vmatpush1.bf16.msra.mxu0 %v781
        %799 = vmatprep.subr.bf16.mxu0 0
        %800 = vmatpush1.bf16.msra.mxu0 %v780
        %801 = vmatprep.subr.bf16.mxu0 0
        %802 = vmatpush1.bf16.msra.mxu0 %v779
        %803 = vmatprep.subr.bf16.mxu0 0
        %804 = vmatpush1.bf16.msra.mxu0 %v778
        %805 = vmatprep.subr.bf16.mxu0 0
        %806 = vmatpush2.bf16.msra.mxu0 0
        %807 = vmatprep.subr.bf16.mxu0 0
        %808 = vmatpush2.bf16.msra.mxu0 0
        %809 = vmatprep.subr.bf16.mxu0 0
        %810 = vmatpush2.bf16.msra.mxu0 0
        %811 = vmatprep.subr.bf16.mxu0 0
        %812 = vmatpush2.bf16.msra.mxu0 0
        %813 = vmatprep.subr.bf16.mxu0 0
        %814 = vmatpush2.bf16.msra.mxu0 0
        %815 = vmatprep.subr.bf16.mxu0 0
        %816 = vmatpush2.bf16.msra.mxu0 0
        %817 = vmatprep.subr.bf16.mxu0 0
        %818 = vmatpush2.bf16.msra.mxu0 0
        %819 = vmatprep.subr.bf16.mxu0 0
        %820 = vmatpush2.bf16.msra.mxu0 0
        %821 = vmatprep.mubr.bf16.mxu0 0
        %822 = vmatmul.mubr.bf16.gmra.mxu0 %v787
        %v823 = vpop.f32.mrf.mxu0
        %v824 = vadd.f32 %v760, %v823
        %v825 = vpop.f32.mrf.mxu0
        %v826 = vpop.f32.mrf.mxu0
        %v827 = vadd.f32 %v760, %v826
        %v828 = vpop.f32.mrf.mxu0
        %829 = vdwg.mxu0
        %832 = vrot.lane.b32.xlu0 %v740, 112
        %v833 = vpop.permute.xlu0 %832
        %834 = vrot.lane.b32.xlu0 %v743, 112
        %v835 = vpop.permute.xlu0 %834
        %838 = vrot.lane.b32.xlu0 %v740, 96
        %v839 = vpop.permute.xlu0 %838
        %840 = vrot.lane.b32.xlu0 %v743, 96
        %v841 = vpop.permute.xlu0 %840
        %844 = vrot.lane.b32.xlu0 %v740, 80
        %v845 = vpop.permute.xlu0 %844
        %846 = vrot.lane.b32.xlu0 %v743, 80
        %v847 = vpop.permute.xlu0 %846
        %v850 = vcombine.low %v740, %v839
        %v851 = vcombine.high %v740, %v839
        %v853 = vunpack.c.l.s4 1983009808
        %v854 = vunpack.c.0.s8 %v853
        %v855 = vlaneseq
        %v856 = vshrl.u32 %v855, 7
        %v857 = vsub.s32 %v854, %v856
        %v858 = vrot.slane %v850, %v857
        %v860 = vunpack.c.l.s4 1983009808
        %v861 = vunpack.c.0.s8 %v860
        %v862 = vlaneseq
        %v863 = vshrl.u32 %v862, 7
        %v864 = vsub.s32 %v861, %v863
        %v865 = vrot.slane %v851, %v864
        %v866 = vcombine.low %v833, %v845
        %v867 = vcombine.high %v833, %v845
        %v869 = vunpack.c.l.s4 1983009808
        %v870 = vunpack.c.0.s8 %v869
        %v871 = vlaneseq
        %v872 = vshrl.u32 %v871, 7
        %v873 = vsub.s32 %v870, %v872
        %v874 = vrot.slane %v866, %v873
        %v876 = vunpack.c.l.s4 1983009808
        %v877 = vunpack.c.0.s8 %v876
        %v878 = vlaneseq
        %v879 = vshrl.u32 %v878, 7
        %v880 = vsub.s32 %v877, %v879
        %v881 = vrot.slane %v867, %v880
        %v882 = vcombine.low %v858, %v874
        %v883 = vcombine.high %v858, %v874
        %v885 = vunpack.c.l.s4 1934713408
        %v886 = vunpack.c.0.s8 %v885
        %v887 = vlaneseq
        %v888 = vshrl.u32 %v887, 7
        %v889 = vsub.s32 %v886, %v888
        %v890 = vrot.slane %v882, %v889
        %v892 = vunpack.c.l.s4 1934713408
        %v893 = vunpack.c.0.s8 %v892
        %v894 = vlaneseq
        %v895 = vshrl.u32 %v894, 7
        %v896 = vsub.s32 %v893, %v895
        %v897 = vrot.slane %v883, %v896
        %v898 = vcombine.low %v865, %v881
        %v899 = vcombine.high %v865, %v881
        %v901 = vunpack.c.l.s4 1934713408
        %v902 = vunpack.c.0.s8 %v901
        %v903 = vlaneseq
        %v904 = vshrl.u32 %v903, 7
        %v905 = vsub.s32 %v902, %v904
        %v906 = vrot.slane %v898, %v905
        %v908 = vunpack.c.l.s4 1934713408
        %v909 = vunpack.c.0.s8 %v908
        %v910 = vlaneseq
        %v911 = vshrl.u32 %v910, 7
        %v912 = vsub.s32 %v909, %v911
        %v913 = vrot.slane %v899, %v912
        %v914 = vcombine.high %v890, 0.0
        %v915 = vcombine.high %v897, 0.0
        %v916 = vcombine.high %v906, 0.0
        %v917 = vcombine.high %v913, 0.0
        %v918 = vcombine.low %v743, %v841
        %v919 = vcombine.high %v743, %v841
        %v921 = vunpack.c.l.s4 1983009808
        %v922 = vunpack.c.0.s8 %v921
        %v923 = vlaneseq
        %v924 = vshrl.u32 %v923, 7
        %v925 = vsub.s32 %v922, %v924
        %v926 = vrot.slane %v918, %v925
        %v928 = vunpack.c.l.s4 1983009808
        %v929 = vunpack.c.0.s8 %v928
        %v930 = vlaneseq
        %v931 = vshrl.u32 %v930, 7
        %v932 = vsub.s32 %v929, %v931
        %v933 = vrot.slane %v919, %v932
        %v934 = vcombine.low %v835, %v847
        %v935 = vcombine.high %v835, %v847
        %v937 = vunpack.c.l.s4 1983009808
        %v938 = vunpack.c.0.s8 %v937
        %v939 = vlaneseq
        %v940 = vshrl.u32 %v939, 7
        %v941 = vsub.s32 %v938, %v940
        %v942 = vrot.slane %v934, %v941
        %v944 = vunpack.c.l.s4 1983009808
        %v945 = vunpack.c.0.s8 %v944
        %v946 = vlaneseq
        %v947 = vshrl.u32 %v946, 7
        %v948 = vsub.s32 %v945, %v947
        %v949 = vrot.slane %v935, %v948
        %v950 = vcombine.low %v926, %v942
        %v951 = vcombine.high %v926, %v942
        %v953 = vunpack.c.l.s4 1934713408
        %v954 = vunpack.c.0.s8 %v953
        %v955 = vlaneseq
        %v956 = vshrl.u32 %v955, 7
        %v957 = vsub.s32 %v954, %v956
        %v958 = vrot.slane %v950, %v957
        %v960 = vunpack.c.l.s4 1934713408
        %v961 = vunpack.c.0.s8 %v960
        %v962 = vlaneseq
        %v963 = vshrl.u32 %v962, 7
        %v964 = vsub.s32 %v961, %v963
        %v965 = vrot.slane %v951, %v964
        %v966 = vcombine.low %v933, %v949
        %v967 = vcombine.high %v933, %v949
        %v969 = vunpack.c.l.s4 1934713408
        %v970 = vunpack.c.0.s8 %v969
        %v971 = vlaneseq
        %v972 = vshrl.u32 %v971, 7
        %v973 = vsub.s32 %v970, %v972
        %v974 = vrot.slane %v966, %v973
        %v976 = vunpack.c.l.s4 1934713408
        %v977 = vunpack.c.0.s8 %v976
        %v978 = vlaneseq
        %v979 = vshrl.u32 %v978, 7
        %v980 = vsub.s32 %v977, %v979
        %v981 = vrot.slane %v967, %v980
        %v982 = vcombine.high %v958, 0.0
        %v983 = vcombine.high %v965, 0.0
        %v984 = vcombine.high %v974, 0.0
        %v985 = vcombine.high %v981, 0.0
        %v986 = vcombine.low %v890, %v897
        %v988 = vunpack.c.l.s4 1983009808
        %v989 = vunpack.c.0.s8 %v988
        %v990 = vlaneseq
        %v991 = vshrl.u32 %v990, 7
        %v992 = vsub.s32 %v989, %v991
        %v993 = vrot.slane %v986, %v992
        %v994 = vcombine.low %v914, %v915
        %v996 = vunpack.c.l.s4 1983009808
        %v997 = vunpack.c.0.s8 %v996
        %v998 = vlaneseq
        %v999 = vshrl.u32 %v998, 7
        %v1000 = vsub.s32 %v997, %v999
        %v1001 = vrot.slane %v994, %v1000
        %v1002 = vcombine.low %v906, %v913
        %v1004 = vunpack.c.l.s4 1983009808
        %v1005 = vunpack.c.0.s8 %v1004
        %v1006 = vlaneseq
        %v1007 = vshrl.u32 %v1006, 7
        %v1008 = vsub.s32 %v1005, %v1007
        %v1009 = vrot.slane %v1002, %v1008
        %v1010 = vcombine.low %v916, %v917
        %v1012 = vunpack.c.l.s4 1983009808
        %v1013 = vunpack.c.0.s8 %v1012
        %v1014 = vlaneseq
        %v1015 = vshrl.u32 %v1014, 7
        %v1016 = vsub.s32 %v1013, %v1015
        %v1017 = vrot.slane %v1010, %v1016
        %v1018 = vcombine.low %v993, %v1001
        %v1019 = vcombine.high %v993, %v1001
        %v1021 = vunpack.c.l.s4 1934713408
        %v1022 = vunpack.c.0.s8 %v1021
        %v1023 = vlaneseq
        %v1024 = vshrl.u32 %v1023, 7
        %v1025 = vsub.s32 %v1022, %v1024
        %v1026 = vrot.slane %v1018, %v1025
        %v1028 = vunpack.c.l.s4 1934713408
        %v1029 = vunpack.c.0.s8 %v1028
        %v1030 = vlaneseq
        %v1031 = vshrl.u32 %v1030, 7
        %v1032 = vsub.s32 %v1029, %v1031
        %v1033 = vrot.slane %v1019, %v1032
        %v1034 = vcombine.low %v1009, %v1017
        %v1035 = vcombine.high %v1009, %v1017
        %v1037 = vunpack.c.l.s4 1934713408
        %v1038 = vunpack.c.0.s8 %v1037
        %v1039 = vlaneseq
        %v1040 = vshrl.u32 %v1039, 7
        %v1041 = vsub.s32 %v1038, %v1040
        %v1042 = vrot.slane %v1034, %v1041
        %v1044 = vunpack.c.l.s4 1934713408
        %v1045 = vunpack.c.0.s8 %v1044
        %v1046 = vlaneseq
        %v1047 = vshrl.u32 %v1046, 7
        %v1048 = vsub.s32 %v1045, %v1047
        %v1049 = vrot.slane %v1035, %v1048
        %v1050 = vcombine.low %v1026, %v1042
        %v1051 = vcombine.high %v1026, %v1042
        %v1052 = vcombine.low %v1033, %v1049
        %v1053 = vcombine.high %v1033, %v1049
        %v1054 = vcombine.low %v958, %v965
        %v1056 = vunpack.c.l.s4 1983009808
        %v1057 = vunpack.c.0.s8 %v1056
        %v1058 = vlaneseq
        %v1059 = vshrl.u32 %v1058, 7
        %v1060 = vsub.s32 %v1057, %v1059
        %v1061 = vrot.slane %v1054, %v1060
        %v1062 = vcombine.low %v982, %v983
        %v1064 = vunpack.c.l.s4 1983009808
        %v1065 = vunpack.c.0.s8 %v1064
        %v1066 = vlaneseq
        %v1067 = vshrl.u32 %v1066, 7
        %v1068 = vsub.s32 %v1065, %v1067
        %v1069 = vrot.slane %v1062, %v1068
        %v1070 = vcombine.low %v974, %v981
        %v1072 = vunpack.c.l.s4 1983009808
        %v1073 = vunpack.c.0.s8 %v1072
        %v1074 = vlaneseq
        %v1075 = vshrl.u32 %v1074, 7
        %v1076 = vsub.s32 %v1073, %v1075
        %v1077 = vrot.slane %v1070, %v1076
        %v1078 = vcombine.low %v984, %v985
        %v1080 = vunpack.c.l.s4 1983009808
        %v1081 = vunpack.c.0.s8 %v1080
        %v1082 = vlaneseq
        %v1083 = vshrl.u32 %v1082, 7
        %v1084 = vsub.s32 %v1081, %v1083
        %v1085 = vrot.slane %v1078, %v1084
        %v1086 = vcombine.low %v1061, %v1069
        %v1087 = vcombine.high %v1061, %v1069
        %v1089 = vunpack.c.l.s4 1934713408
        %v1090 = vunpack.c.0.s8 %v1089
        %v1091 = vlaneseq
        %v1092 = vshrl.u32 %v1091, 7
        %v1093 = vsub.s32 %v1090, %v1092
        %v1094 = vrot.slane %v1086, %v1093
        %v1096 = vunpack.c.l.s4 1934713408
        %v1097 = vunpack.c.0.s8 %v1096
        %v1098 = vlaneseq
        %v1099 = vshrl.u32 %v1098, 7
        %v1100 = vsub.s32 %v1097, %v1099
        %v1101 = vrot.slane %v1087, %v1100
        %v1102 = vcombine.low %v1077, %v1085
        %v1103 = vcombine.high %v1077, %v1085
        %v1105 = vunpack.c.l.s4 1934713408
        %v1106 = vunpack.c.0.s8 %v1105
        %v1107 = vlaneseq
        %v1108 = vshrl.u32 %v1107, 7
        %v1109 = vsub.s32 %v1106, %v1108
        %v1110 = vrot.slane %v1102, %v1109
        %v1112 = vunpack.c.l.s4 1934713408
        %v1113 = vunpack.c.0.s8 %v1112
        %v1114 = vlaneseq
        %v1115 = vshrl.u32 %v1114, 7
        %v1116 = vsub.s32 %v1113, %v1115
        %v1117 = vrot.slane %v1103, %v1116
        %v1118 = vcombine.low %v1094, %v1110
        %v1119 = vcombine.high %v1094, %v1110
        %v1120 = vcombine.low %v1101, %v1117
        %v1121 = vcombine.high %v1101, %v1117
        %v1122 = vpack.c.bf16 %v1118, %v1050
        %v1123 = vpack.c.bf16 %v1119, %v1051
        %v1124 = vpack.c.bf16 %v1120, %v1052
        %v1125 = vpack.c.bf16 %v1121, %v1053
        %1128 = vrot.lane.b32.xlu0 %v824, 112
        %v1129 = vpop.permute.xlu0 %1128
        %1130 = vrot.lane.b32.xlu0 %v827, 112
        %v1131 = vpop.permute.xlu0 %1130
        %1134 = vrot.lane.b32.xlu0 %v824, 96
        %v1135 = vpop.permute.xlu0 %1134
        %1136 = vrot.lane.b32.xlu0 %v827, 96
        %v1137 = vpop.permute.xlu0 %1136
        %1140 = vrot.lane.b32.xlu0 %v824, 80
        %v1141 = vpop.permute.xlu0 %1140
        %1142 = vrot.lane.b32.xlu0 %v827, 80
        %v1143 = vpop.permute.xlu0 %1142
        %v1146 = vcombine.low %v824, %v1135
        %v1147 = vcombine.high %v824, %v1135
        %v1149 = vunpack.c.l.s4 1983009808
        %v1150 = vunpack.c.0.s8 %v1149
        %v1151 = vlaneseq
        %v1152 = vshrl.u32 %v1151, 7
        %v1153 = vsub.s32 %v1150, %v1152
        %v1154 = vrot.slane %v1146, %v1153
        %v1156 = vunpack.c.l.s4 1983009808
        %v1157 = vunpack.c.0.s8 %v1156
        %v1158 = vlaneseq
        %v1159 = vshrl.u32 %v1158, 7
        %v1160 = vsub.s32 %v1157, %v1159
        %v1161 = vrot.slane %v1147, %v1160
        %v1162 = vcombine.low %v1129, %v1141
        %v1163 = vcombine.high %v1129, %v1141
        %v1165 = vunpack.c.l.s4 1983009808
        %v1166 = vunpack.c.0.s8 %v1165
        %v1167 = vlaneseq
        %v1168 = vshrl.u32 %v1167, 7
        %v1169 = vsub.s32 %v1166, %v1168
        %v1170 = vrot.slane %v1162, %v1169
        %v1172 = vunpack.c.l.s4 1983009808
        %v1173 = vunpack.c.0.s8 %v1172
        %v1174 = vlaneseq
        %v1175 = vshrl.u32 %v1174, 7
        %v1176 = vsub.s32 %v1173, %v1175
        %v1177 = vrot.slane %v1163, %v1176
        %v1178 = vcombine.low %v1154, %v1170
        %v1179 = vcombine.high %v1154, %v1170
        %v1181 = vunpack.c.l.s4 1934713408
        %v1182 = vunpack.c.0.s8 %v1181
        %v1183 = vlaneseq
        %v1184 = vshrl.u32 %v1183, 7
        %v1185 = vsub.s32 %v1182, %v1184
        %v1186 = vrot.slane %v1178, %v1185
        %v1188 = vunpack.c.l.s4 1934713408
        %v1189 = vunpack.c.0.s8 %v1188
        %v1190 = vlaneseq
        %v1191 = vshrl.u32 %v1190, 7
        %v1192 = vsub.s32 %v1189, %v1191
        %v1193 = vrot.slane %v1179, %v1192
        %v1194 = vcombine.low %v1161, %v1177
        %v1195 = vcombine.high %v1161, %v1177
        %v1197 = vunpack.c.l.s4 1934713408
        %v1198 = vunpack.c.0.s8 %v1197
        %v1199 = vlaneseq
        %v1200 = vshrl.u32 %v1199, 7
        %v1201 = vsub.s32 %v1198, %v1200
        %v1202 = vrot.slane %v1194, %v1201
        %v1204 = vunpack.c.l.s4 1934713408
        %v1205 = vunpack.c.0.s8 %v1204
        %v1206 = vlaneseq
        %v1207 = vshrl.u32 %v1206, 7
        %v1208 = vsub.s32 %v1205, %v1207
        %v1209 = vrot.slane %v1195, %v1208
        %v1210 = vcombine.high %v1186, 0.0
        %v1211 = vcombine.high %v1193, 0.0
        %v1212 = vcombine.high %v1202, 0.0
        %v1213 = vcombine.high %v1209, 0.0
        %v1214 = vcombine.low %v827, %v1137
        %v1215 = vcombine.high %v827, %v1137
        %v1217 = vunpack.c.l.s4 1983009808
        %v1218 = vunpack.c.0.s8 %v1217
        %v1219 = vlaneseq
        %v1220 = vshrl.u32 %v1219, 7
        %v1221 = vsub.s32 %v1218, %v1220
        %v1222 = vrot.slane %v1214, %v1221
        %v1224 = vunpack.c.l.s4 1983009808
        %v1225 = vunpack.c.0.s8 %v1224
        %v1226 = vlaneseq
        %v1227 = vshrl.u32 %v1226, 7
        %v1228 = vsub.s32 %v1225, %v1227
        %v1229 = vrot.slane %v1215, %v1228
        %v1230 = vcombine.low %v1131, %v1143
        %v1231 = vcombine.high %v1131, %v1143
        %v1233 = vunpack.c.l.s4 1983009808
        %v1234 = vunpack.c.0.s8 %v1233
        %v1235 = vlaneseq
        %v1236 = vshrl.u32 %v1235, 7
        %v1237 = vsub.s32 %v1234, %v1236
        %v1238 = vrot.slane %v1230, %v1237
        %v1240 = vunpack.c.l.s4 1983009808
        %v1241 = vunpack.c.0.s8 %v1240
        %v1242 = vlaneseq
        %v1243 = vshrl.u32 %v1242, 7
        %v1244 = vsub.s32 %v1241, %v1243
        %v1245 = vrot.slane %v1231, %v1244
        %v1246 = vcombine.low %v1222, %v1238
        %v1247 = vcombine.high %v1222, %v1238
        %v1249 = vunpack.c.l.s4 1934713408
        %v1250 = vunpack.c.0.s8 %v1249
        %v1251 = vlaneseq
        %v1252 = vshrl.u32 %v1251, 7
        %v1253 = vsub.s32 %v1250, %v1252
        %v1254 = vrot.slane %v1246, %v1253
        %v1256 = vunpack.c.l.s4 1934713408
        %v1257 = vunpack.c.0.s8 %v1256
        %v1258 = vlaneseq
        %v1259 = vshrl.u32 %v1258, 7
        %v1260 = vsub.s32 %v1257, %v1259
        %v1261 = vrot.slane %v1247, %v1260
        %v1262 = vcombine.low %v1229, %v1245
        %v1263 = vcombine.high %v1229, %v1245
        %v1265 = vunpack.c.l.s4 1934713408
        %v1266 = vunpack.c.0.s8 %v1265
        %v1267 = vlaneseq
        %v1268 = vshrl.u32 %v1267, 7
        %v1269 = vsub.s32 %v1266, %v1268
        %v1270 = vrot.slane %v1262, %v1269
        %v1272 = vunpack.c.l.s4 1934713408
        %v1273 = vunpack.c.0.s8 %v1272
        %v1274 = vlaneseq
        %v1275 = vshrl.u32 %v1274, 7
        %v1276 = vsub.s32 %v1273, %v1275
        %v1277 = vrot.slane %v1263, %v1276
        %v1278 = vcombine.high %v1254, 0.0
        %v1279 = vcombine.high %v1261, 0.0
        %v1280 = vcombine.high %v1270, 0.0
        %v1281 = vcombine.high %v1277, 0.0
        %v1282 = vcombine.low %v1186, %v1193
        %v1284 = vunpack.c.l.s4 1983009808
        %v1285 = vunpack.c.0.s8 %v1284
        %v1286 = vlaneseq
        %v1287 = vshrl.u32 %v1286, 7
        %v1288 = vsub.s32 %v1285, %v1287
        %v1289 = vrot.slane %v1282, %v1288
        %v1290 = vcombine.low %v1210, %v1211
        %v1292 = vunpack.c.l.s4 1983009808
        %v1293 = vunpack.c.0.s8 %v1292
        %v1294 = vlaneseq
        %v1295 = vshrl.u32 %v1294, 7
        %v1296 = vsub.s32 %v1293, %v1295
        %v1297 = vrot.slane %v1290, %v1296
        %v1298 = vcombine.low %v1202, %v1209
        %v1300 = vunpack.c.l.s4 1983009808
        %v1301 = vunpack.c.0.s8 %v1300
        %v1302 = vlaneseq
        %v1303 = vshrl.u32 %v1302, 7
        %v1304 = vsub.s32 %v1301, %v1303
        %v1305 = vrot.slane %v1298, %v1304
        %v1306 = vcombine.low %v1212, %v1213
        %v1308 = vunpack.c.l.s4 1983009808
        %v1309 = vunpack.c.0.s8 %v1308
        %v1310 = vlaneseq
        %v1311 = vshrl.u32 %v1310, 7
        %v1312 = vsub.s32 %v1309, %v1311
        %v1313 = vrot.slane %v1306, %v1312
        %v1314 = vcombine.low %v1289, %v1297
        %v1315 = vcombine.high %v1289, %v1297
        %v1317 = vunpack.c.l.s4 1934713408
        %v1318 = vunpack.c.0.s8 %v1317
        %v1319 = vlaneseq
        %v1320 = vshrl.u32 %v1319, 7
        %v1321 = vsub.s32 %v1318, %v1320
        %v1322 = vrot.slane %v1314, %v1321
        %v1324 = vunpack.c.l.s4 1934713408
        %v1325 = vunpack.c.0.s8 %v1324
        %v1326 = vlaneseq
        %v1327 = vshrl.u32 %v1326, 7
        %v1328 = vsub.s32 %v1325, %v1327
        %v1329 = vrot.slane %v1315, %v1328
        %v1330 = vcombine.low %v1305, %v1313
        %v1331 = vcombine.high %v1305, %v1313
        %v1333 = vunpack.c.l.s4 1934713408
        %v1334 = vunpack.c.0.s8 %v1333
        %v1335 = vlaneseq
        %v1336 = vshrl.u32 %v1335, 7
        %v1337 = vsub.s32 %v1334, %v1336
        %v1338 = vrot.slane %v1330, %v1337
        %v1340 = vunpack.c.l.s4 1934713408
        %v1341 = vunpack.c.0.s8 %v1340
        %v1342 = vlaneseq
        %v1343 = vshrl.u32 %v1342, 7
        %v1344 = vsub.s32 %v1341, %v1343
        %v1345 = vrot.slane %v1331, %v1344
        %v1346 = vcombine.low %v1322, %v1338
        %v1347 = vcombine.high %v1322, %v1338
        %v1348 = vcombine.low %v1329, %v1345
        %v1349 = vcombine.high %v1329, %v1345
        %v1350 = vcombine.low %v1254, %v1261
        %v1352 = vunpack.c.l.s4 1983009808
        %v1353 = vunpack.c.0.s8 %v1352
        %v1354 = vlaneseq
        %v1355 = vshrl.u32 %v1354, 7
        %v1356 = vsub.s32 %v1353, %v1355
        %v1357 = vrot.slane %v1350, %v1356
        %v1358 = vcombine.low %v1278, %v1279
        %v1360 = vunpack.c.l.s4 1983009808
        %v1361 = vunpack.c.0.s8 %v1360
        %v1362 = vlaneseq
        %v1363 = vshrl.u32 %v1362, 7
        %v1364 = vsub.s32 %v1361, %v1363
        %v1365 = vrot.slane %v1358, %v1364
        %v1366 = vcombine.low %v1270, %v1277
        %v1368 = vunpack.c.l.s4 1983009808
        %v1369 = vunpack.c.0.s8 %v1368
        %v1370 = vlaneseq
        %v1371 = vshrl.u32 %v1370, 7
        %v1372 = vsub.s32 %v1369, %v1371
        %v1373 = vrot.slane %v1366, %v1372
        %v1374 = vcombine.low %v1280, %v1281
        %v1376 = vunpack.c.l.s4 1983009808
        %v1377 = vunpack.c.0.s8 %v1376
        %v1378 = vlaneseq
        %v1379 = vshrl.u32 %v1378, 7
        %v1380 = vsub.s32 %v1377, %v1379
        %v1381 = vrot.slane %v1374, %v1380
        %v1382 = vcombine.low %v1357, %v1365
        %v1383 = vcombine.high %v1357, %v1365
        %v1385 = vunpack.c.l.s4 1934713408
        %v1386 = vunpack.c.0.s8 %v1385
        %v1387 = vlaneseq
        %v1388 = vshrl.u32 %v1387, 7
        %v1389 = vsub.s32 %v1386, %v1388
        %v1390 = vrot.slane %v1382, %v1389
        %v1392 = vunpack.c.l.s4 1934713408
        %v1393 = vunpack.c.0.s8 %v1392
        %v1394 = vlaneseq
        %v1395 = vshrl.u32 %v1394, 7
        %v1396 = vsub.s32 %v1393, %v1395
        %v1397 = vrot.slane %v1383, %v1396
        %v1398 = vcombine.low %v1373, %v1381
        %v1399 = vcombine.high %v1373, %v1381
        %v1401 = vunpack.c.l.s4 1934713408
        %v1402 = vunpack.c.0.s8 %v1401
        %v1403 = vlaneseq
        %v1404 = vshrl.u32 %v1403, 7
        %v1405 = vsub.s32 %v1402, %v1404
        %v1406 = vrot.slane %v1398, %v1405
        %v1408 = vunpack.c.l.s4 1934713408
        %v1409 = vunpack.c.0.s8 %v1408
        %v1410 = vlaneseq
        %v1411 = vshrl.u32 %v1410, 7
        %v1412 = vsub.s32 %v1409, %v1411
        %v1413 = vrot.slane %v1399, %v1412
        %v1414 = vcombine.low %v1390, %v1406
        %v1415 = vcombine.high %v1390, %v1406
        %v1416 = vcombine.low %v1397, %v1413
        %v1417 = vcombine.high %v1397, %v1413
        %v1418 = vpack.c.bf16 %v1414, %v1346
        %v1419 = vpack.c.bf16 %v1415, %v1347
        %v1420 = vpack.c.bf16 %v1416, %v1348
        %v1421 = vpack.c.bf16 %v1417, %v1349
        %1422 = vrot.lane.b32.xlu0 %v824, 64
        %v1423 = vpop.permute.xlu0 %1422
        %1424 = vrot.lane.b32.xlu0 %v827, 64
        %v1425 = vpop.permute.xlu0 %1424
        %1426 = vrot.lane.b32.xlu0 %v1129, 64
        %v1427 = vpop.permute.xlu0 %1426
        %1428 = vrot.lane.b32.xlu0 %v1131, 64
        %v1429 = vpop.permute.xlu0 %1428
        %1430 = vrot.lane.b32.xlu0 %v1135, 64
        %v1431 = vpop.permute.xlu0 %1430
        %1432 = vrot.lane.b32.xlu0 %v1137, 64
        %v1433 = vpop.permute.xlu0 %1432
        %1434 = vrot.lane.b32.xlu0 %v1141, 64
        %v1435 = vpop.permute.xlu0 %1434
        %1436 = vrot.lane.b32.xlu0 %v1143, 64
        %v1437 = vpop.permute.xlu0 %1436
        %v1446 = vcombine.low %v1423, %v1431
        %v1447 = vcombine.high %v1423, %v1431
        %v1449 = vunpack.c.l.s4 1983009808
        %v1450 = vunpack.c.0.s8 %v1449
        %v1451 = vlaneseq
        %v1452 = vshrl.u32 %v1451, 7
        %v1453 = vsub.s32 %v1450, %v1452
        %v1454 = vrot.slane %v1446, %v1453
        %v1456 = vunpack.c.l.s4 1983009808
        %v1457 = vunpack.c.0.s8 %v1456
        %v1458 = vlaneseq
        %v1459 = vshrl.u32 %v1458, 7
        %v1460 = vsub.s32 %v1457, %v1459
        %v1461 = vrot.slane %v1447, %v1460
        %v1462 = vcombine.low %v1427, %v1435
        %v1463 = vcombine.high %v1427, %v1435
        %v1465 = vunpack.c.l.s4 1983009808
        %v1466 = vunpack.c.0.s8 %v1465
        %v1467 = vlaneseq
        %v1468 = vshrl.u32 %v1467, 7
        %v1469 = vsub.s32 %v1466, %v1468
        %v1470 = vrot.slane %v1462, %v1469
        %v1472 = vunpack.c.l.s4 1983009808
        %v1473 = vunpack.c.0.s8 %v1472
        %v1474 = vlaneseq
        %v1475 = vshrl.u32 %v1474, 7
        %v1476 = vsub.s32 %v1473, %v1475
        %v1477 = vrot.slane %v1463, %v1476
        %v1478 = vcombine.low %v1454, %v1470
        %v1479 = vcombine.high %v1454, %v1470
        %v1481 = vunpack.c.l.s4 1934713408
        %v1482 = vunpack.c.0.s8 %v1481
        %v1483 = vlaneseq
        %v1484 = vshrl.u32 %v1483, 7
        %v1485 = vsub.s32 %v1482, %v1484
        %v1486 = vrot.slane %v1478, %v1485
        %v1488 = vunpack.c.l.s4 1934713408
        %v1489 = vunpack.c.0.s8 %v1488
        %v1490 = vlaneseq
        %v1491 = vshrl.u32 %v1490, 7
        %v1492 = vsub.s32 %v1489, %v1491
        %v1493 = vrot.slane %v1479, %v1492
        %v1494 = vcombine.low %v1461, %v1477
        %v1495 = vcombine.high %v1461, %v1477
        %v1497 = vunpack.c.l.s4 1934713408
        %v1498 = vunpack.c.0.s8 %v1497
        %v1499 = vlaneseq
        %v1500 = vshrl.u32 %v1499, 7
        %v1501 = vsub.s32 %v1498, %v1500
        %v1502 = vrot.slane %v1494, %v1501
        %v1504 = vunpack.c.l.s4 1934713408
        %v1505 = vunpack.c.0.s8 %v1504
        %v1506 = vlaneseq
        %v1507 = vshrl.u32 %v1506, 7
        %v1508 = vsub.s32 %v1505, %v1507
        %v1509 = vrot.slane %v1495, %v1508
        %v1510 = vcombine.high %v1486, 0.0
        %v1511 = vcombine.high %v1493, 0.0
        %v1512 = vcombine.high %v1502, 0.0
        %v1513 = vcombine.high %v1509, 0.0
        %v1514 = vcombine.low %v1425, %v1433
        %v1515 = vcombine.high %v1425, %v1433
        %v1517 = vunpack.c.l.s4 1983009808
        %v1518 = vunpack.c.0.s8 %v1517
        %v1519 = vlaneseq
        %v1520 = vshrl.u32 %v1519, 7
        %v1521 = vsub.s32 %v1518, %v1520
        %v1522 = vrot.slane %v1514, %v1521
        %v1524 = vunpack.c.l.s4 1983009808
        %v1525 = vunpack.c.0.s8 %v1524
        %v1526 = vlaneseq
        %v1527 = vshrl.u32 %v1526, 7
        %v1528 = vsub.s32 %v1525, %v1527
        %v1529 = vrot.slane %v1515, %v1528
        %v1530 = vcombine.low %v1429, %v1437
        %v1531 = vcombine.high %v1429, %v1437
        %v1533 = vunpack.c.l.s4 1983009808
        %v1534 = vunpack.c.0.s8 %v1533
        %v1535 = vlaneseq
        %v1536 = vshrl.u32 %v1535, 7
        %v1537 = vsub.s32 %v1534, %v1536
        %v1538 = vrot.slane %v1530, %v1537
        %v1540 = vunpack.c.l.s4 1983009808
        %v1541 = vunpack.c.0.s8 %v1540
        %v1542 = vlaneseq
        %v1543 = vshrl.u32 %v1542, 7
        %v1544 = vsub.s32 %v1541, %v1543
        %v1545 = vrot.slane %v1531, %v1544
        %v1546 = vcombine.low %v1522, %v1538
        %v1547 = vcombine.high %v1522, %v1538
        %v1549 = vunpack.c.l.s4 1934713408
        %v1550 = vunpack.c.0.s8 %v1549
        %v1551 = vlaneseq
        %v1552 = vshrl.u32 %v1551, 7
        %v1553 = vsub.s32 %v1550, %v1552
        %v1554 = vrot.slane %v1546, %v1553
        %v1556 = vunpack.c.l.s4 1934713408
        %v1557 = vunpack.c.0.s8 %v1556
        %v1558 = vlaneseq
        %v1559 = vshrl.u32 %v1558, 7
        %v1560 = vsub.s32 %v1557, %v1559
        %v1561 = vrot.slane %v1547, %v1560
        %v1562 = vcombine.low %v1529, %v1545
        %v1563 = vcombine.high %v1529, %v1545
        %v1565 = vunpack.c.l.s4 1934713408
        %v1566 = vunpack.c.0.s8 %v1565
        %v1567 = vlaneseq
        %v1568 = vshrl.u32 %v1567, 7
        %v1569 = vsub.s32 %v1566, %v1568
        %v1570 = vrot.slane %v1562, %v1569
        %v1572 = vunpack.c.l.s4 1934713408
        %v1573 = vunpack.c.0.s8 %v1572
        %v1574 = vlaneseq
        %v1575 = vshrl.u32 %v1574, 7
        %v1576 = vsub.s32 %v1573, %v1575
        %v1577 = vrot.slane %v1563, %v1576
        %v1578 = vcombine.high %v1554, 0.0
        %v1579 = vcombine.high %v1561, 0.0
        %v1580 = vcombine.high %v1570, 0.0
        %v1581 = vcombine.high %v1577, 0.0
        %v1582 = vcombine.low %v1486, %v1493
        %v1584 = vunpack.c.l.s4 1983009808
        %v1585 = vunpack.c.0.s8 %v1584
        %v1586 = vlaneseq
        %v1587 = vshrl.u32 %v1586, 7
        %v1588 = vsub.s32 %v1585, %v1587
        %v1589 = vrot.slane %v1582, %v1588
        %v1590 = vcombine.low %v1510, %v1511
        %v1592 = vunpack.c.l.s4 1983009808
        %v1593 = vunpack.c.0.s8 %v1592
        %v1594 = vlaneseq
        %v1595 = vshrl.u32 %v1594, 7
        %v1596 = vsub.s32 %v1593, %v1595
        %v1597 = vrot.slane %v1590, %v1596
        %v1598 = vcombine.low %v1502, %v1509
        %v1600 = vunpack.c.l.s4 1983009808
        %v1601 = vunpack.c.0.s8 %v1600
        %v1602 = vlaneseq
        %v1603 = vshrl.u32 %v1602, 7
        %v1604 = vsub.s32 %v1601, %v1603
        %v1605 = vrot.slane %v1598, %v1604
        %v1606 = vcombine.low %v1512, %v1513
        %v1608 = vunpack.c.l.s4 1983009808
        %v1609 = vunpack.c.0.s8 %v1608
        %v1610 = vlaneseq
        %v1611 = vshrl.u32 %v1610, 7
        %v1612 = vsub.s32 %v1609, %v1611
        %v1613 = vrot.slane %v1606, %v1612
        %v1614 = vcombine.low %v1589, %v1597
        %v1615 = vcombine.high %v1589, %v1597
        %v1617 = vunpack.c.l.s4 1934713408
        %v1618 = vunpack.c.0.s8 %v1617
        %v1619 = vlaneseq
        %v1620 = vshrl.u32 %v1619, 7
        %v1621 = vsub.s32 %v1618, %v1620
        %v1622 = vrot.slane %v1614, %v1621
        %v1624 = vunpack.c.l.s4 1934713408
        %v1625 = vunpack.c.0.s8 %v1624
        %v1626 = vlaneseq
        %v1627 = vshrl.u32 %v1626, 7
        %v1628 = vsub.s32 %v1625, %v1627
        %v1629 = vrot.slane %v1615, %v1628
        %v1630 = vcombine.low %v1605, %v1613
        %v1631 = vcombine.high %v1605, %v1613
        %v1633 = vunpack.c.l.s4 1934713408
        %v1634 = vunpack.c.0.s8 %v1633
        %v1635 = vlaneseq
        %v1636 = vshrl.u32 %v1635, 7
        %v1637 = vsub.s32 %v1634, %v1636
        %v1638 = vrot.slane %v1630, %v1637
        %v1640 = vunpack.c.l.s4 1934713408
        %v1641 = vunpack.c.0.s8 %v1640
        %v1642 = vlaneseq
        %v1643 = vshrl.u32 %v1642, 7
        %v1644 = vsub.s32 %v1641, %v1643
        %v1645 = vrot.slane %v1631, %v1644
        %v1646 = vcombine.low %v1622, %v1638
        %v1647 = vcombine.high %v1622, %v1638
        %v1648 = vcombine.low %v1629, %v1645
        %v1649 = vcombine.high %v1629, %v1645
        %v1650 = vcombine.low %v1554, %v1561
        %v1652 = vunpack.c.l.s4 1983009808
        %v1653 = vunpack.c.0.s8 %v1652
        %v1654 = vlaneseq
        %v1655 = vshrl.u32 %v1654, 7
        %v1656 = vsub.s32 %v1653, %v1655
        %v1657 = vrot.slane %v1650, %v1656
        %v1658 = vcombine.low %v1578, %v1579
        %v1660 = vunpack.c.l.s4 1983009808
        %v1661 = vunpack.c.0.s8 %v1660
        %v1662 = vlaneseq
        %v1663 = vshrl.u32 %v1662, 7
        %v1664 = vsub.s32 %v1661, %v1663
        %v1665 = vrot.slane %v1658, %v1664
        %v1666 = vcombine.low %v1570, %v1577
        %v1668 = vunpack.c.l.s4 1983009808
        %v1669 = vunpack.c.0.s8 %v1668
        %v1670 = vlaneseq
        %v1671 = vshrl.u32 %v1670, 7
        %v1672 = vsub.s32 %v1669, %v1671
        %v1673 = vrot.slane %v1666, %v1672
        %v1674 = vcombine.low %v1580, %v1581
        %v1676 = vunpack.c.l.s4 1983009808
        %v1677 = vunpack.c.0.s8 %v1676
        %v1678 = vlaneseq
        %v1679 = vshrl.u32 %v1678, 7
        %v1680 = vsub.s32 %v1677, %v1679
        %v1681 = vrot.slane %v1674, %v1680
        %v1682 = vcombine.low %v1657, %v1665
        %v1683 = vcombine.high %v1657, %v1665
        %v1685 = vunpack.c.l.s4 1934713408
        %v1686 = vunpack.c.0.s8 %v1685
        %v1687 = vlaneseq
        %v1688 = vshrl.u32 %v1687, 7
        %v1689 = vsub.s32 %v1686, %v1688
        %v1690 = vrot.slane %v1682, %v1689
        %v1692 = vunpack.c.l.s4 1934713408
        %v1693 = vunpack.c.0.s8 %v1692
        %v1694 = vlaneseq
        %v1695 = vshrl.u32 %v1694, 7
        %v1696 = vsub.s32 %v1693, %v1695
        %v1697 = vrot.slane %v1683, %v1696
        %v1698 = vcombine.low %v1673, %v1681
        %v1699 = vcombine.high %v1673, %v1681
        %v1701 = vunpack.c.l.s4 1934713408
        %v1702 = vunpack.c.0.s8 %v1701
        %v1703 = vlaneseq
        %v1704 = vshrl.u32 %v1703, 7
        %v1705 = vsub.s32 %v1702, %v1704
        %v1706 = vrot.slane %v1698, %v1705
        %v1708 = vunpack.c.l.s4 1934713408
        %v1709 = vunpack.c.0.s8 %v1708
        %v1710 = vlaneseq
        %v1711 = vshrl.u32 %v1710, 7
        %v1712 = vsub.s32 %v1709, %v1711
        %v1713 = vrot.slane %v1699, %v1712
        %v1714 = vcombine.low %v1690, %v1706
        %v1715 = vcombine.high %v1690, %v1706
        %v1716 = vcombine.low %v1697, %v1713
        %v1717 = vcombine.high %v1697, %v1713
        %v1718 = vpack.c.bf16 %v1714, %v1646
        %v1719 = vpack.c.bf16 %v1715, %v1647
        %v1720 = vpack.c.bf16 %v1716, %v1648
        %v1721 = vpack.c.bf16 %v1717, %v1649
        %vm1722 = vcmask 130048
        %v1724 = vsel %vm1722, %v1122, 0
        %v1727 = vsel %vm1722, %v1418, 0
        %1729 = vmatprep.subr.bf16.mxu0 0
        %1730 = vmatpush1.bf16.xpose.msra.mxu0 0
        %1731 = vmatprep.subr.bf16.mxu0 0
        %1732 = vmatpush1.bf16.xpose.msra.mxu0 0
        %1733 = vmatprep.subr.bf16.mxu0 0
        %1734 = vmatpush1.bf16.xpose.msra.mxu0 0
        %1735 = vmatprep.subr.bf16.mxu0 0
        %1736 = vmatpush1.bf16.xpose.msra.mxu0 0
        %1737 = vmatprep.subr.bf16.mxu0 0
        %1738 = vmatpush1.bf16.xpose.msra.mxu0 0
        %1739 = vmatprep.subr.bf16.mxu0 0
        %1740 = vmatpush1.bf16.xpose.msra.mxu0 0
        %1741 = vmatprep.subr.bf16.mxu0 0
        %1742 = vmatpush1.bf16.xpose.msra.mxu0 0
        %1743 = vmatprep.subr.bf16.mxu0 0
        %1744 = vmatpush1.bf16.xpose.msra.mxu0 %v1727
        %1745 = vmatprep.subr.bf16.mxu0 0
        %1746 = vmatpush2.bf16.xpose.msra.mxu0 0
        %1747 = vmatprep.subr.bf16.mxu0 0
        %1748 = vmatpush2.bf16.xpose.msra.mxu0 0
        %1749 = vmatprep.subr.bf16.mxu0 0
        %1750 = vmatpush2.bf16.xpose.msra.mxu0 0
        %1751 = vmatprep.subr.bf16.mxu0 0
        %1752 = vmatpush2.bf16.xpose.msra.mxu0 0
        %1753 = vmatprep.subr.bf16.mxu0 0
        %1754 = vmatpush2.bf16.xpose.msra.mxu0 0
        %1755 = vmatprep.subr.bf16.mxu0 0
        %1756 = vmatpush2.bf16.xpose.msra.mxu0 0
        %1757 = vmatprep.subr.bf16.mxu0 0
        %1758 = vmatpush2.bf16.xpose.msra.mxu0 0
        %1759 = vmatprep.subr.bf16.mxu0 0
        %1760 = vmatpush2.bf16.xpose.msra.mxu0 0
        %1761 = vmatprep.mubr.bf16.mxu0 0
        %1762 = vmatmul.mubr.bf16.gmra.mxu0 %v1724
        %v1763 = vpop.f32.mrf.mxu0
        %v1764 = vadd.f32 0.0, %v1763
        %v1765 = vpop.f32.mrf.mxu0
        %v1766 = vpop.f32.mrf.mxu0
        %v1767 = vadd.f32 0.0, %v1766
        %v1768 = vpop.f32.mrf.mxu0
        %1769 = vdwg.mxu0
        %v1771 = vsel %vm1722, %v1123, 0
        %v1774 = vsel %vm1722, %v1419, 0
        %1776 = vmatprep.subr.bf16.mxu0 0
        %1777 = vmatpush1.bf16.xpose.msra.mxu0 0
        %1778 = vmatprep.subr.bf16.mxu0 0
        %1779 = vmatpush1.bf16.xpose.msra.mxu0 0
        %1780 = vmatprep.subr.bf16.mxu0 0
        %1781 = vmatpush1.bf16.xpose.msra.mxu0 0
        %1782 = vmatprep.subr.bf16.mxu0 0
        %1783 = vmatpush1.bf16.xpose.msra.mxu0 0
        %1784 = vmatprep.subr.bf16.mxu0 0
        %1785 = vmatpush1.bf16.xpose.msra.mxu0 0
        %1786 = vmatprep.subr.bf16.mxu0 0
        %1787 = vmatpush1.bf16.xpose.msra.mxu0 0
        %1788 = vmatprep.subr.bf16.mxu0 0
        %1789 = vmatpush1.bf16.xpose.msra.mxu0 0
        %1790 = vmatprep.subr.bf16.mxu0 0
        %1791 = vmatpush1.bf16.xpose.msra.mxu0 %v1774
        %1792 = vmatprep.subr.bf16.mxu0 0
        %1793 = vmatpush2.bf16.xpose.msra.mxu0 0
        %1794 = vmatprep.subr.bf16.mxu0 0
        %1795 = vmatpush2.bf16.xpose.msra.mxu0 0
        %1796 = vmatprep.subr.bf16.mxu0 0
        %1797 = vmatpush2.bf16.xpose.msra.mxu0 0
        %1798 = vmatprep.subr.bf16.mxu0 0
        %1799 = vmatpush2.bf16.xpose.msra.mxu0 0
        %1800 = vmatprep.subr.bf16.mxu0 0
        %1801 = vmatpush2.bf16.xpose.msra.mxu0 0
        %1802 = vmatprep.subr.bf16.mxu0 0
        %1803 = vmatpush2.bf16.xpose.msra.mxu0 0
        %1804 = vmatprep.subr.bf16.mxu0 0
        %1805 = vmatpush2.bf16.xpose.msra.mxu0 0
        %1806 = vmatprep.subr.bf16.mxu0 0
        %1807 = vmatpush2.bf16.xpose.msra.mxu0 0
        %1808 = vmatprep.mubr.bf16.mxu0 0
        %1809 = vmatmul.mubr.bf16.gmra.mxu0 %v1771
        %v1810 = vpop.f32.mrf.mxu0
        %v1811 = vadd.f32 0.0, %v1810
        %v1812 = vpop.f32.mrf.mxu0
        %v1813 = vpop.f32.mrf.mxu0
        %v1814 = vadd.f32 0.0, %v1813
        %v1815 = vpop.f32.mrf.mxu0
        %1816 = vdwg.mxu0
        %v1818 = vsel %vm1722, %v1124, 0
        %v1821 = vsel %vm1722, %v1420, 0
        %1823 = vmatprep.subr.bf16.mxu0 0
        %1824 = vmatpush1.bf16.xpose.msra.mxu0 0
        %1825 = vmatprep.subr.bf16.mxu0 0
        %1826 = vmatpush1.bf16.xpose.msra.mxu0 0
        %1827 = vmatprep.subr.bf16.mxu0 0
        %1828 = vmatpush1.bf16.xpose.msra.mxu0 0
        %1829 = vmatprep.subr.bf16.mxu0 0
        %1830 = vmatpush1.bf16.xpose.msra.mxu0 0
        %1831 = vmatprep.subr.bf16.mxu0 0
        %1832 = vmatpush1.bf16.xpose.msra.mxu0 0
        %1833 = vmatprep.subr.bf16.mxu0 0
        %1834 = vmatpush1.bf16.xpose.msra.mxu0 0
        %1835 = vmatprep.subr.bf16.mxu0 0
        %1836 = vmatpush1.bf16.xpose.msra.mxu0 0
        %1837 = vmatprep.subr.bf16.mxu0 0
        %1838 = vmatpush1.bf16.xpose.msra.mxu0 %v1821
        %1839 = vmatprep.subr.bf16.mxu0 0
        %1840 = vmatpush2.bf16.xpose.msra.mxu0 0
        %1841 = vmatprep.subr.bf16.mxu0 0
        %1842 = vmatpush2.bf16.xpose.msra.mxu0 0
        %1843 = vmatprep.subr.bf16.mxu0 0
        %1844 = vmatpush2.bf16.xpose.msra.mxu0 0
        %1845 = vmatprep.subr.bf16.mxu0 0
        %1846 = vmatpush2.bf16.xpose.msra.mxu0 0
        %1847 = vmatprep.subr.bf16.mxu0 0
        %1848 = vmatpush2.bf16.xpose.msra.mxu0 0
        %1849 = vmatprep.subr.bf16.mxu0 0
        %1850 = vmatpush2.bf16.xpose.msra.mxu0 0
        %1851 = vmatprep.subr.bf16.mxu0 0
        %1852 = vmatpush2.bf16.xpose.msra.mxu0 0
        %1853 = vmatprep.subr.bf16.mxu0 0
        %1854 = vmatpush2.bf16.xpose.msra.mxu0 0
        %1855 = vmatprep.mubr.bf16.mxu0 0
        %1856 = vmatmul.mubr.bf16.gmra.mxu0 %v1818
        %v1857 = vpop.f32.mrf.mxu0
        %v1858 = vadd.f32 0.0, %v1857
        %v1859 = vpop.f32.mrf.mxu0
        %v1860 = vpop.f32.mrf.mxu0
        %v1861 = vadd.f32 0.0, %v1860
        %v1862 = vpop.f32.mrf.mxu0
        %1863 = vdwg.mxu0
        %v1865 = vsel %vm1722, %v1125, 0
        %v1868 = vsel %vm1722, %v1421, 0
        %1870 = vmatprep.subr.bf16.mxu0 0
        %1871 = vmatpush1.bf16.xpose.msra.mxu0 0
        %1872 = vmatprep.subr.bf16.mxu0 0
        %1873 = vmatpush1.bf16.xpose.msra.mxu0 0
        %1874 = vmatprep.subr.bf16.mxu0 0
        %1875 = vmatpush1.bf16.xpose.msra.mxu0 0
        %1876 = vmatprep.subr.bf16.mxu0 0
        %1877 = vmatpush1.bf16.xpose.msra.mxu0 0
        %1878 = vmatprep.subr.bf16.mxu0 0
        %1879 = vmatpush1.bf16.xpose.msra.mxu0 0
        %1880 = vmatprep.subr.bf16.mxu0 0
        %1881 = vmatpush1.bf16.xpose.msra.mxu0 0
        %1882 = vmatprep.subr.bf16.mxu0 0
        %1883 = vmatpush1.bf16.xpose.msra.mxu0 0
        %1884 = vmatprep.subr.bf16.mxu0 0
        %1885 = vmatpush1.bf16.xpose.msra.mxu0 %v1868
        %1886 = vmatprep.subr.bf16.mxu0 0
        %1887 = vmatpush2.bf16.xpose.msra.mxu0 0
        %1888 = vmatprep.subr.bf16.mxu0 0
        %1889 = vmatpush2.bf16.xpose.msra.mxu0 0
        %1890 = vmatprep.subr.bf16.mxu0 0
        %1891 = vmatpush2.bf16.xpose.msra.mxu0 0
        %1892 = vmatprep.subr.bf16.mxu0 0
        %1893 = vmatpush2.bf16.xpose.msra.mxu0 0
        %1894 = vmatprep.subr.bf16.mxu0 0
        %1895 = vmatpush2.bf16.xpose.msra.mxu0 0
        %1896 = vmatprep.subr.bf16.mxu0 0
        %1897 = vmatpush2.bf16.xpose.msra.mxu0 0
        %1898 = vmatprep.subr.bf16.mxu0 0
        %1899 = vmatpush2.bf16.xpose.msra.mxu0 0
        %1900 = vmatprep.subr.bf16.mxu0 0
        %1901 = vmatpush2.bf16.xpose.msra.mxu0 0
        %1902 = vmatprep.mubr.bf16.mxu0 0
        %1903 = vmatmul.mubr.bf16.gmra.mxu0 %v1865
        %v1904 = vpop.f32.mrf.mxu0
        %v1905 = vadd.f32 0.0, %v1904
        %v1906 = vpop.f32.mrf.mxu0
        %v1907 = vpop.f32.mrf.mxu0
        %v1908 = vadd.f32 0.0, %v1907
        %v1909 = vpop.f32.mrf.mxu0
        %1910 = vdwg.mxu0
        %v1911 = vmul.f32 %v1764, 0.25
        %v1912 = vmul.f32 %v1767, 0.25
        %v1913 = vmul.f32 %v1811, 0.25
        %v1914 = vmul.f32 %v1814, 0.25
        %v1915 = vmul.f32 %v1858, 0.25
        %v1916 = vmul.f32 %v1861, 0.25
        %v1917 = vmul.f32 %v1905, 0.25
        %v1918 = vmul.f32 %v1908, 0.25
        %v1919 = vsel %vm1722, %v1911, -inf
        %1920 = vmax.xlane.f32.xlu0 %v1919
        %v1921 = vpop.xlane.xlu0 %1920
        %v1922 = vsel %vm1722, %v1912, -inf
        %1923 = vmax.xlane.f32.xlu0 %v1922
        %v1924 = vpop.xlane.xlu0 %1923
        %v1925 = vsel %vm1722, %v1913, -inf
        %1926 = vmax.xlane.f32.xlu0 %v1925
        %v1927 = vpop.xlane.xlu0 %1926
        %v1928 = vsel %vm1722, %v1914, -inf
        %1929 = vmax.xlane.f32.xlu0 %v1928
        %v1930 = vpop.xlane.xlu0 %1929
        %v1931 = vsel %vm1722, %v1915, -inf
        %1932 = vmax.xlane.f32.xlu0 %v1931
        %v1933 = vpop.xlane.xlu0 %1932
        %v1934 = vsel %vm1722, %v1916, -inf
        %1935 = vmax.xlane.f32.xlu0 %v1934
        %v1936 = vpop.xlane.xlu0 %1935
        %v1937 = vsel %vm1722, %v1917, -inf
        %1938 = vmax.xlane.f32.xlu0 %v1937
        %v1939 = vpop.xlane.xlu0 %1938
        %v1940 = vsel %vm1722, %v1918, -inf
        %1941 = vmax.xlane.f32.xlu0 %v1940
        %v1942 = vpop.xlane.xlu0 %1941
        %v1943 = vsub.f32 %v1911, %v1921
        %v1944 = vsub.f32 %v1912, %v1924
        %v1945 = vsub.f32 %v1913, %v1927
        %v1946 = vsub.f32 %v1914, %v1930
        %v1947 = vsub.f32 %v1915, %v1933
        %v1948 = vsub.f32 %v1916, %v1936
        %v1949 = vsub.f32 %v1917, %v1939
        %v1950 = vsub.f32 %v1918, %v1942
        %v1951 = vmul.f32 %v1943, 1.442695
        %v1952 = vpow.pop %v1951
        %v1953 = vmul.f32 %v1944, 1.442695
        %v1954 = vpow.pop %v1953
        %v1955 = vmul.f32 %v1945, 1.442695
        %v1956 = vpow.pop %v1955
        %v1957 = vmul.f32 %v1946, 1.442695
        %v1958 = vpow.pop %v1957
        %v1959 = vmul.f32 %v1947, 1.442695
        %v1960 = vpow.pop %v1959
        %v1961 = vmul.f32 %v1948, 1.442695
        %v1962 = vpow.pop %v1961
        %v1963 = vmul.f32 %v1949, 1.442695
        %v1964 = vpow.pop %v1963
        %v1965 = vmul.f32 %v1950, 1.442695
        %v1966 = vpow.pop %v1965
        %v1967 = vsel %vm1722, %v1952, 0.0
        %1968 = vadd.xlane.f32.xlu0 %v1967
        %v1969 = vpop.xlane.xlu0 %1968
        %v1970 = vsel %vm1722, %v1954, 0.0
        %1971 = vadd.xlane.f32.xlu0 %v1970
        %v1972 = vpop.xlane.xlu0 %1971
        %v1973 = vsel %vm1722, %v1956, 0.0
        %1974 = vadd.xlane.f32.xlu0 %v1973
        %v1975 = vpop.xlane.xlu0 %1974
        %v1976 = vsel %vm1722, %v1958, 0.0
        %1977 = vadd.xlane.f32.xlu0 %v1976
        %v1978 = vpop.xlane.xlu0 %1977
        %v1979 = vsel %vm1722, %v1960, 0.0
        %1980 = vadd.xlane.f32.xlu0 %v1979
        %v1981 = vpop.xlane.xlu0 %1980
        %v1982 = vsel %vm1722, %v1962, 0.0
        %1983 = vadd.xlane.f32.xlu0 %v1982
        %v1984 = vpop.xlane.xlu0 %1983
        %v1985 = vsel %vm1722, %v1964, 0.0
        %1986 = vadd.xlane.f32.xlu0 %v1985
        %v1987 = vpop.xlane.xlu0 %1986
        %v1988 = vsel %vm1722, %v1966, 0.0
        %1989 = vadd.xlane.f32.xlu0 %v1988
        %v1990 = vpop.xlane.xlu0 %1989
        %v1991 = vrcp.pop %v1969
        %v1992 = vrcp.pop %v1972
        %v1993 = vrcp.pop %v1975
        %v1994 = vrcp.pop %v1978
        %v1995 = vrcp.pop %v1981
        %v1996 = vrcp.pop %v1984
        %v1997 = vrcp.pop %v1987
        %v1998 = vrcp.pop %v1990
        %v1999 = vmul.f32 %v1952, %v1991
        %v2000 = vmul.f32 %v1954, %v1992
        %v2001 = vmul.f32 %v1956, %v1993
        %v2002 = vmul.f32 %v1958, %v1994
        %v2003 = vmul.f32 %v1960, %v1995
        %v2004 = vmul.f32 %v1962, %v1996
        %v2005 = vmul.f32 %v1964, %v1997
        %v2006 = vmul.f32 %v1966, %v1998
        %2007 = vst.msk [vmem:[%s638] sm:$0xff] %vm1722, %v1999
        %2008 = vst.msk [vmem:[%s638 + $0x8] sm:$0xff] %vm1722, %v2000
        %2009 = vst.msk [vmem:[%s638 + $0x10] sm:$0xff] %vm1722, %v2001
        %2010 = vst.msk [vmem:[%s638 + $0x18] sm:$0xff] %vm1722, %v2002
        %2011 = vst.msk [vmem:[%s638 + $0x20] sm:$0xff] %vm1722, %v2003
        %2012 = vst.msk [vmem:[%s638 + $0x28] sm:$0xff] %vm1722, %v2004
        %2013 = vst.msk [vmem:[%s638 + $0x30] sm:$0xff] %vm1722, %v2005
        %2014 = vst.msk [vmem:[%s638 + $0x38] sm:$0xff] %vm1722, %v2006
        %v2015 = vpack.c.bf16 %v2000, %v1999
        %v2016 = vpack.c.bf16 %v2002, %v2001
        %v2017 = vpack.c.bf16 %v2004, %v2003
        %v2018 = vpack.c.bf16 %v2006, %v2005
        %v2020 = vsel %vm1722, %v2015, 0
        %2022 = vmatprep.subr.bf16.mxu0 0
        %2023 = vmatpush1.bf16.msra.mxu0 0
        %2024 = vmatprep.subr.bf16.mxu0 0
        %2025 = vmatpush1.bf16.msra.mxu0 0
        %2026 = vmatprep.subr.bf16.mxu0 0
        %2027 = vmatpush1.bf16.msra.mxu0 0
        %2028 = vmatprep.subr.bf16.mxu0 0
        %2029 = vmatpush1.bf16.msra.mxu0 0
        %2030 = vmatprep.subr.bf16.mxu0 0
        %2031 = vmatpush1.bf16.msra.mxu0 0
        %2032 = vmatprep.subr.bf16.mxu0 0
        %2033 = vmatpush1.bf16.msra.mxu0 0
        %2034 = vmatprep.subr.bf16.mxu0 0
        %2035 = vmatpush1.bf16.msra.mxu0 0
        %2036 = vmatprep.subr.bf16.mxu0 0
        %2037 = vmatpush1.bf16.msra.mxu0 %v1718
        %2038 = vmatprep.subr.bf16.mxu0 0
        %2039 = vmatpush2.bf16.msra.mxu0 0
        %2040 = vmatprep.subr.bf16.mxu0 0
        %2041 = vmatpush2.bf16.msra.mxu0 0
        %2042 = vmatprep.subr.bf16.mxu0 0
        %2043 = vmatpush2.bf16.msra.mxu0 0
        %2044 = vmatprep.subr.bf16.mxu0 0
        %2045 = vmatpush2.bf16.msra.mxu0 0
        %2046 = vmatprep.subr.bf16.mxu0 0
        %2047 = vmatpush2.bf16.msra.mxu0 0
        %2048 = vmatprep.subr.bf16.mxu0 0
        %2049 = vmatpush2.bf16.msra.mxu0 0
        %2050 = vmatprep.subr.bf16.mxu0 0
        %2051 = vmatpush2.bf16.msra.mxu0 0
        %2052 = vmatprep.subr.bf16.mxu0 0
        %2053 = vmatpush2.bf16.msra.mxu0 0
        %2054 = vmatprep.mubr.bf16.mxu0 0
        %2055 = vmatmul.mubr.bf16.gmra.mxu0 %v2020
        %v2056 = vpop.f32.mrf.mxu0
        %v2057 = vadd.f32 0.0, %v2056
        %v2058 = vpop.f32.mrf.mxu0
        %v2059 = vpop.f32.mrf.mxu0
        %v2060 = vadd.f32 0.0, %v2059
        %v2061 = vpop.f32.mrf.mxu0
        %2062 = vdwg.mxu0
        %v2064 = vsel %vm1722, %v2016, 0
        %2066 = vmatprep.subr.bf16.mxu0 0
        %2067 = vmatpush1.bf16.msra.mxu0 0
        %2068 = vmatprep.subr.bf16.mxu0 0
        %2069 = vmatpush1.bf16.msra.mxu0 0
        %2070 = vmatprep.subr.bf16.mxu0 0
        %2071 = vmatpush1.bf16.msra.mxu0 0
        %2072 = vmatprep.subr.bf16.mxu0 0
        %2073 = vmatpush1.bf16.msra.mxu0 0
        %2074 = vmatprep.subr.bf16.mxu0 0
        %2075 = vmatpush1.bf16.msra.mxu0 0
        %2076 = vmatprep.subr.bf16.mxu0 0
        %2077 = vmatpush1.bf16.msra.mxu0 0
        %2078 = vmatprep.subr.bf16.mxu0 0
        %2079 = vmatpush1.bf16.msra.mxu0 0
        %2080 = vmatprep.subr.bf16.mxu0 0
        %2081 = vmatpush1.bf16.msra.mxu0 %v1719
        %2082 = vmatprep.subr.bf16.mxu0 0
        %2083 = vmatpush2.bf16.msra.mxu0 0
        %2084 = vmatprep.subr.bf16.mxu0 0
        %2085 = vmatpush2.bf16.msra.mxu0 0
        %2086 = vmatprep.subr.bf16.mxu0 0
        %2087 = vmatpush2.bf16.msra.mxu0 0
        %2088 = vmatprep.subr.bf16.mxu0 0
        %2089 = vmatpush2.bf16.msra.mxu0 0
        %2090 = vmatprep.subr.bf16.mxu0 0
        %2091 = vmatpush2.bf16.msra.mxu0 0
        %2092 = vmatprep.subr.bf16.mxu0 0
        %2093 = vmatpush2.bf16.msra.mxu0 0
        %2094 = vmatprep.subr.bf16.mxu0 0
        %2095 = vmatpush2.bf16.msra.mxu0 0
        %2096 = vmatprep.subr.bf16.mxu0 0
        %2097 = vmatpush2.bf16.msra.mxu0 0
        %2098 = vmatprep.mubr.bf16.mxu0 0
        %2099 = vmatmul.mubr.bf16.gmra.mxu0 %v2064
        %v2100 = vpop.f32.mrf.mxu0
        %v2101 = vadd.f32 0.0, %v2100
        %v2102 = vpop.f32.mrf.mxu0
        %v2103 = vpop.f32.mrf.mxu0
        %v2104 = vadd.f32 0.0, %v2103
        %v2105 = vpop.f32.mrf.mxu0
        %2106 = vdwg.mxu0
        %v2108 = vsel %vm1722, %v2017, 0
        %2110 = vmatprep.subr.bf16.mxu0 0
        %2111 = vmatpush1.bf16.msra.mxu0 0
        %2112 = vmatprep.subr.bf16.mxu0 0
        %2113 = vmatpush1.bf16.msra.mxu0 0
        %2114 = vmatprep.subr.bf16.mxu0 0
        %2115 = vmatpush1.bf16.msra.mxu0 0
        %2116 = vmatprep.subr.bf16.mxu0 0
        %2117 = vmatpush1.bf16.msra.mxu0 0
        %2118 = vmatprep.subr.bf16.mxu0 0
        %2119 = vmatpush1.bf16.msra.mxu0 0
        %2120 = vmatprep.subr.bf16.mxu0 0
        %2121 = vmatpush1.bf16.msra.mxu0 0
        %2122 = vmatprep.subr.bf16.mxu0 0
        %2123 = vmatpush1.bf16.msra.mxu0 0
        %2124 = vmatprep.subr.bf16.mxu0 0
        %2125 = vmatpush1.bf16.msra.mxu0 %v1720
        %2126 = vmatprep.subr.bf16.mxu0 0
        %2127 = vmatpush2.bf16.msra.mxu0 0
        %2128 = vmatprep.subr.bf16.mxu0 0
        %2129 = vmatpush2.bf16.msra.mxu0 0
        %2130 = vmatprep.subr.bf16.mxu0 0
        %2131 = vmatpush2.bf16.msra.mxu0 0
        %2132 = vmatprep.subr.bf16.mxu0 0
        %2133 = vmatpush2.bf16.msra.mxu0 0
        %2134 = vmatprep.subr.bf16.mxu0 0
        %2135 = vmatpush2.bf16.msra.mxu0 0
        %2136 = vmatprep.subr.bf16.mxu0 0
        %2137 = vmatpush2.bf16.msra.mxu0 0
        %2138 = vmatprep.subr.bf16.mxu0 0
        %2139 = vmatpush2.bf16.msra.mxu0 0
        %2140 = vmatprep.subr.bf16.mxu0 0
        %2141 = vmatpush2.bf16.msra.mxu0 0
        %2142 = vmatprep.mubr.bf16.mxu0 0
        %2143 = vmatmul.mubr.bf16.gmra.mxu0 %v2108
        %v2144 = vpop.f32.mrf.mxu0
        %v2145 = vadd.f32 0.0, %v2144
        %v2146 = vpop.f32.mrf.mxu0
        %v2147 = vpop.f32.mrf.mxu0
        %v2148 = vadd.f32 0.0, %v2147
        %v2149 = vpop.f32.mrf.mxu0
        %2150 = vdwg.mxu0
        %v2152 = vsel %vm1722, %v2018, 0
        %2154 = vmatprep.subr.bf16.mxu0 0
        %2155 = vmatpush1.bf16.msra.mxu0 0
        %2156 = vmatprep.subr.bf16.mxu0 0
        %2157 = vmatpush1.bf16.msra.mxu0 0
        %2158 = vmatprep.subr.bf16.mxu0 0
        %2159 = vmatpush1.bf16.msra.mxu0 0
        %2160 = vmatprep.subr.bf16.mxu0 0
        %2161 = vmatpush1.bf16.msra.mxu0 0
        %2162 = vmatprep.subr.bf16.mxu0 0
        %2163 = vmatpush1.bf16.msra.mxu0 0
        %2164 = vmatprep.subr.bf16.mxu0 0
        %2165 = vmatpush1.bf16.msra.mxu0 0
        %2166 = vmatprep.subr.bf16.mxu0 0
        %2167 = vmatpush1.bf16.msra.mxu0 0
        %2168 = vmatprep.subr.bf16.mxu0 0
        %2169 = vmatpush1.bf16.msra.mxu0 %v1721
        %2170 = vmatprep.subr.bf16.mxu0 0
        %2171 = vmatpush2.bf16.msra.mxu0 0
        %2172 = vmatprep.subr.bf16.mxu0 0
        %2173 = vmatpush2.bf16.msra.mxu0 0
        %2174 = vmatprep.subr.bf16.mxu0 0
        %2175 = vmatpush2.bf16.msra.mxu0 0
        %2176 = vmatprep.subr.bf16.mxu0 0
        %2177 = vmatpush2.bf16.msra.mxu0 0
        %2178 = vmatprep.subr.bf16.mxu0 0
        %2179 = vmatpush2.bf16.msra.mxu0 0
        %2180 = vmatprep.subr.bf16.mxu0 0
        %2181 = vmatpush2.bf16.msra.mxu0 0
        %2182 = vmatprep.subr.bf16.mxu0 0
        %2183 = vmatpush2.bf16.msra.mxu0 0
        %2184 = vmatprep.subr.bf16.mxu0 0
        %2185 = vmatpush2.bf16.msra.mxu0 0
        %2186 = vmatprep.mubr.bf16.mxu0 0
        %2187 = vmatmul.mubr.bf16.gmra.mxu0 %v2152
        %v2188 = vpop.f32.mrf.mxu0
        %v2189 = vadd.f32 0.0, %v2188
        %v2190 = vpop.f32.mrf.mxu0
        %v2191 = vpop.f32.mrf.mxu0
        %v2192 = vadd.f32 0.0, %v2191
        %v2193 = vpop.f32.mrf.mxu0
        %2194 = vdwg.mxu0
        %v2195 = vcombine.low %v2057, %v2145
        %v2196 = vcombine.high %v2057, %v2145
        %v2198 = vunpack.c.l.s4 1983009808
        %v2199 = vunpack.c.0.s8 %v2198
        %v2200 = vlaneseq
        %v2201 = vshrl.u32 %v2200, 7
        %v2202 = vsub.s32 %v2199, %v2201
        %v2203 = vrot.slane %v2195, %v2202
        %v2205 = vunpack.c.l.s4 1983009808
        %v2206 = vunpack.c.0.s8 %v2205
        %v2207 = vlaneseq
        %v2208 = vshrl.u32 %v2207, 7
        %v2209 = vsub.s32 %v2206, %v2208
        %v2210 = vrot.slane %v2196, %v2209
        %v2211 = vcombine.low %v2101, %v2189
        %v2212 = vcombine.high %v2101, %v2189
        %v2214 = vunpack.c.l.s4 1983009808
        %v2215 = vunpack.c.0.s8 %v2214
        %v2216 = vlaneseq
        %v2217 = vshrl.u32 %v2216, 7
        %v2218 = vsub.s32 %v2215, %v2217
        %v2219 = vrot.slane %v2211, %v2218
        %v2221 = vunpack.c.l.s4 1983009808
        %v2222 = vunpack.c.0.s8 %v2221
        %v2223 = vlaneseq
        %v2224 = vshrl.u32 %v2223, 7
        %v2225 = vsub.s32 %v2222, %v2224
        %v2226 = vrot.slane %v2212, %v2225
        %v2227 = vcombine.low %v2203, %v2219
        %v2228 = vcombine.high %v2203, %v2219
        %v2230 = vunpack.c.l.s4 1934713408
        %v2231 = vunpack.c.0.s8 %v2230
        %v2232 = vlaneseq
        %v2233 = vshrl.u32 %v2232, 7
        %v2234 = vsub.s32 %v2231, %v2233
        %v2235 = vrot.slane %v2227, %v2234
        %v2237 = vunpack.c.l.s4 1934713408
        %v2238 = vunpack.c.0.s8 %v2237
        %v2239 = vlaneseq
        %v2240 = vshrl.u32 %v2239, 7
        %v2241 = vsub.s32 %v2238, %v2240
        %v2242 = vrot.slane %v2228, %v2241
        %v2243 = vcombine.low %v2210, %v2226
        %v2244 = vcombine.high %v2210, %v2226
        %v2246 = vunpack.c.l.s4 1934713408
        %v2247 = vunpack.c.0.s8 %v2246
        %v2248 = vlaneseq
        %v2249 = vshrl.u32 %v2248, 7
        %v2250 = vsub.s32 %v2247, %v2249
        %v2251 = vrot.slane %v2243, %v2250
        %v2253 = vunpack.c.l.s4 1934713408
        %v2254 = vunpack.c.0.s8 %v2253
        %v2255 = vlaneseq
        %v2256 = vshrl.u32 %v2255, 7
        %v2257 = vsub.s32 %v2254, %v2256
        %v2258 = vrot.slane %v2244, %v2257
        %v2259 = vcombine.high %v2235, 0.0
        %v2260 = vcombine.high %v2242, 0.0
        %v2261 = vcombine.high %v2251, 0.0
        %v2262 = vcombine.high %v2258, 0.0
        %v2263 = vcombine.low %v2060, %v2148
        %v2264 = vcombine.high %v2060, %v2148
        %v2266 = vunpack.c.l.s4 1983009808
        %v2267 = vunpack.c.0.s8 %v2266
        %v2268 = vlaneseq
        %v2269 = vshrl.u32 %v2268, 7
        %v2270 = vsub.s32 %v2267, %v2269
        %v2271 = vrot.slane %v2263, %v2270
        %v2273 = vunpack.c.l.s4 1983009808
        %v2274 = vunpack.c.0.s8 %v2273
        %v2275 = vlaneseq
        %v2276 = vshrl.u32 %v2275, 7
        %v2277 = vsub.s32 %v2274, %v2276
        %v2278 = vrot.slane %v2264, %v2277
        %v2279 = vcombine.low %v2104, %v2192
        %v2280 = vcombine.high %v2104, %v2192
        %v2282 = vunpack.c.l.s4 1983009808
        %v2283 = vunpack.c.0.s8 %v2282
        %v2284 = vlaneseq
        %v2285 = vshrl.u32 %v2284, 7
        %v2286 = vsub.s32 %v2283, %v2285
        %v2287 = vrot.slane %v2279, %v2286
        %v2289 = vunpack.c.l.s4 1983009808
        %v2290 = vunpack.c.0.s8 %v2289
        %v2291 = vlaneseq
        %v2292 = vshrl.u32 %v2291, 7
        %v2293 = vsub.s32 %v2290, %v2292
        %v2294 = vrot.slane %v2280, %v2293
        %v2295 = vcombine.low %v2271, %v2287
        %v2296 = vcombine.high %v2271, %v2287
        %v2298 = vunpack.c.l.s4 1934713408
        %v2299 = vunpack.c.0.s8 %v2298
        %v2300 = vlaneseq
        %v2301 = vshrl.u32 %v2300, 7
        %v2302 = vsub.s32 %v2299, %v2301
        %v2303 = vrot.slane %v2295, %v2302
        %v2305 = vunpack.c.l.s4 1934713408
        %v2306 = vunpack.c.0.s8 %v2305
        %v2307 = vlaneseq
        %v2308 = vshrl.u32 %v2307, 7
        %v2309 = vsub.s32 %v2306, %v2308
        %v2310 = vrot.slane %v2296, %v2309
        %v2311 = vcombine.low %v2278, %v2294
        %v2312 = vcombine.high %v2278, %v2294
        %v2314 = vunpack.c.l.s4 1934713408
        %v2315 = vunpack.c.0.s8 %v2314
        %v2316 = vlaneseq
        %v2317 = vshrl.u32 %v2316, 7
        %v2318 = vsub.s32 %v2315, %v2317
        %v2319 = vrot.slane %v2311, %v2318
        %v2321 = vunpack.c.l.s4 1934713408
        %v2322 = vunpack.c.0.s8 %v2321
        %v2323 = vlaneseq
        %v2324 = vshrl.u32 %v2323, 7
        %v2325 = vsub.s32 %v2322, %v2324
        %v2326 = vrot.slane %v2312, %v2325
        %v2327 = vcombine.high %v2303, 0.0
        %v2328 = vcombine.high %v2310, 0.0
        %v2329 = vcombine.high %v2319, 0.0
        %v2330 = vcombine.high %v2326, 0.0
        %v2331 = vcombine.low %v2235, %v2242
        %v2333 = vunpack.c.l.s4 1983009808
        %v2334 = vunpack.c.0.s8 %v2333
        %v2335 = vlaneseq
        %v2336 = vshrl.u32 %v2335, 7
        %v2337 = vsub.s32 %v2334, %v2336
        %v2338 = vrot.slane %v2331, %v2337
        %v2339 = vcombine.low %v2259, %v2260
        %v2341 = vunpack.c.l.s4 1983009808
        %v2342 = vunpack.c.0.s8 %v2341
        %v2343 = vlaneseq
        %v2344 = vshrl.u32 %v2343, 7
        %v2345 = vsub.s32 %v2342, %v2344
        %v2346 = vrot.slane %v2339, %v2345
        %v2347 = vcombine.low %v2251, %v2258
        %v2349 = vunpack.c.l.s4 1983009808
        %v2350 = vunpack.c.0.s8 %v2349
        %v2351 = vlaneseq
        %v2352 = vshrl.u32 %v2351, 7
        %v2353 = vsub.s32 %v2350, %v2352
        %v2354 = vrot.slane %v2347, %v2353
        %v2355 = vcombine.low %v2261, %v2262
        %v2357 = vunpack.c.l.s4 1983009808
        %v2358 = vunpack.c.0.s8 %v2357
        %v2359 = vlaneseq
        %v2360 = vshrl.u32 %v2359, 7
        %v2361 = vsub.s32 %v2358, %v2360
        %v2362 = vrot.slane %v2355, %v2361
        %v2363 = vcombine.low %v2338, %v2346
        %v2364 = vcombine.high %v2338, %v2346
        %v2366 = vunpack.c.l.s4 1934713408
        %v2367 = vunpack.c.0.s8 %v2366
        %v2368 = vlaneseq
        %v2369 = vshrl.u32 %v2368, 7
        %v2370 = vsub.s32 %v2367, %v2369
        %v2371 = vrot.slane %v2363, %v2370
        %v2373 = vunpack.c.l.s4 1934713408
        %v2374 = vunpack.c.0.s8 %v2373
        %v2375 = vlaneseq
        %v2376 = vshrl.u32 %v2375, 7
        %v2377 = vsub.s32 %v2374, %v2376
        %v2378 = vrot.slane %v2364, %v2377
        %v2379 = vcombine.low %v2354, %v2362
        %v2380 = vcombine.high %v2354, %v2362
        %v2382 = vunpack.c.l.s4 1934713408
        %v2383 = vunpack.c.0.s8 %v2382
        %v2384 = vlaneseq
        %v2385 = vshrl.u32 %v2384, 7
        %v2386 = vsub.s32 %v2383, %v2385
        %v2387 = vrot.slane %v2379, %v2386
        %v2389 = vunpack.c.l.s4 1934713408
        %v2390 = vunpack.c.0.s8 %v2389
        %v2391 = vlaneseq
        %v2392 = vshrl.u32 %v2391, 7
        %v2393 = vsub.s32 %v2390, %v2392
        %v2394 = vrot.slane %v2380, %v2393
        %v2395 = vcombine.low %v2371, %v2387
        %v2396 = vcombine.high %v2371, %v2387
        %v2397 = vcombine.low %v2378, %v2394
        %v2398 = vcombine.high %v2378, %v2394
        %v2399 = vcombine.low %v2303, %v2310
        %v2401 = vunpack.c.l.s4 1983009808
        %v2402 = vunpack.c.0.s8 %v2401
        %v2403 = vlaneseq
        %v2404 = vshrl.u32 %v2403, 7
        %v2405 = vsub.s32 %v2402, %v2404
        %v2406 = vrot.slane %v2399, %v2405
        %v2407 = vcombine.low %v2327, %v2328
        %v2409 = vunpack.c.l.s4 1983009808
        %v2410 = vunpack.c.0.s8 %v2409
        %v2411 = vlaneseq
        %v2412 = vshrl.u32 %v2411, 7
        %v2413 = vsub.s32 %v2410, %v2412
        %v2414 = vrot.slane %v2407, %v2413
        %v2415 = vcombine.low %v2319, %v2326
        %v2417 = vunpack.c.l.s4 1983009808
        %v2418 = vunpack.c.0.s8 %v2417
        %v2419 = vlaneseq
        %v2420 = vshrl.u32 %v2419, 7
        %v2421 = vsub.s32 %v2418, %v2420
        %v2422 = vrot.slane %v2415, %v2421
        %v2423 = vcombine.low %v2329, %v2330
        %v2425 = vunpack.c.l.s4 1983009808
        %v2426 = vunpack.c.0.s8 %v2425
        %v2427 = vlaneseq
        %v2428 = vshrl.u32 %v2427, 7
        %v2429 = vsub.s32 %v2426, %v2428
        %v2430 = vrot.slane %v2423, %v2429
        %v2431 = vcombine.low %v2406, %v2414
        %v2432 = vcombine.high %v2406, %v2414
        %v2434 = vunpack.c.l.s4 1934713408
        %v2435 = vunpack.c.0.s8 %v2434
        %v2436 = vlaneseq
        %v2437 = vshrl.u32 %v2436, 7
        %v2438 = vsub.s32 %v2435, %v2437
        %v2439 = vrot.slane %v2431, %v2438
        %v2441 = vunpack.c.l.s4 1934713408
        %v2442 = vunpack.c.0.s8 %v2441
        %v2443 = vlaneseq
        %v2444 = vshrl.u32 %v2443, 7
        %v2445 = vsub.s32 %v2442, %v2444
        %v2446 = vrot.slane %v2432, %v2445
        %v2447 = vcombine.low %v2422, %v2430
        %v2448 = vcombine.high %v2422, %v2430
        %v2450 = vunpack.c.l.s4 1934713408
        %v2451 = vunpack.c.0.s8 %v2450
        %v2452 = vlaneseq
        %v2453 = vshrl.u32 %v2452, 7
        %v2454 = vsub.s32 %v2451, %v2453
        %v2455 = vrot.slane %v2447, %v2454
        %v2457 = vunpack.c.l.s4 1934713408
        %v2458 = vunpack.c.0.s8 %v2457
        %v2459 = vlaneseq
        %v2460 = vshrl.u32 %v2459, 7
        %v2461 = vsub.s32 %v2458, %v2460
        %v2462 = vrot.slane %v2448, %v2461
        %v2463 = vcombine.low %v2439, %v2455
        %v2464 = vcombine.high %v2439, %v2455
        %v2465 = vcombine.low %v2446, %v2462
        %v2466 = vcombine.high %v2446, %v2462
        %2469 = vrot.lane.b32.xlu0 %v2396, 16
        %v2470 = vpop.permute.xlu0 %2469
        %2471 = vrot.lane.b32.xlu0 %v2464, 16
        %v2472 = vpop.permute.xlu0 %2471
        %2477 = vrot.lane.b32.xlu0 %v2397, 32
        %v2478 = vpop.permute.xlu0 %2477
        %2479 = vrot.lane.b32.xlu0 %v2465, 32
        %v2480 = vpop.permute.xlu0 %2479
        %2485 = vrot.lane.b32.xlu0 %v2398, 48
        %v2486 = vpop.permute.xlu0 %2485
        %2487 = vrot.lane.b32.xlu0 %v2466, 48
        %v2488 = vpop.permute.xlu0 %2487
        %v2491 = vsel %vm1722, %v2395, %v2470
        %v2492 = vsel %vm1722, %v2463, %v2472
        %vm2493 = vcmask 261120
        %v2494 = vsel %vm2493, %v2491, %v2478
        %v2495 = vsel %vm2493, %v2492, %v2480
        %vm2496 = vcmask 392192
        %v2497 = vsel %vm2496, %v2494, %v2486
        %v2498 = vsel %vm2496, %v2495, %v2488
        %v2499 = vpack.c.bf16 %v2498, %v2497
        %v2500 = vld [vmem:[#allocation5] sm:$0xf]
        %v2501 = vld [vmem:[#allocation5 + $0x4] sm:$0xf]
        %v2502 = vld [vmem:[#allocation5 + $0x8] sm:$0xf]
        %v2503 = vld [vmem:[#allocation5 + $0xc] sm:$0xf]
        %v2504 = vld [vmem:[#allocation5 + $0x10] sm:$0xf]
        %v2505 = vld [vmem:[#allocation5 + $0x14] sm:$0xf]
        %v2506 = vld [vmem:[#allocation5 + $0x18] sm:$0xf]
        %v2507 = vld [vmem:[#allocation5 + $0x1c] sm:$0xf]
        %v2508 = vld [vmem:[%s7] sm:$0x1]
        %v2510 = vlaneseq
        %v2511 = vshrl.u32 %v2510, 7
        %v2512 = vsub.s32 0, %v2511
        %v2513 = vrot.slane %v2508, %v2512
        %v2523 = vunpack.c.l.b16 %v2500
        %v2524 = vunpack.c.l.b16 %v2501
        %v2525 = vunpack.c.l.b16 %v2502
        %v2526 = vunpack.c.l.b16 %v2503
        %v2527 = vunpack.c.l.b16 %v2504
        %v2528 = vunpack.c.l.b16 %v2505
        %v2529 = vunpack.c.l.b16 %v2506
        %v2530 = vunpack.c.l.b16 %v2507
        %v2531 = vpack.c.b16 %v2524, %v2523
        %v2532 = vpack.c.b16 %v2526, %v2525
        %v2533 = vpack.c.b16 %v2528, %v2527
        %v2534 = vpack.c.b16 %v2530, %v2529
        %v2540 = vsel %vm701, %v2499, 0
        %2542 = vmatprep.subr.bf16.mxu0 0
        %2543 = vmatpush1.bf16.msra.mxu0 0
        %2544 = vmatprep.subr.bf16.mxu0 0
        %2545 = vmatpush1.bf16.msra.mxu0 0
        %2546 = vmatprep.subr.bf16.mxu0 0
        %2547 = vmatpush1.bf16.msra.mxu0 0
        %2548 = vmatprep.subr.bf16.mxu0 0
        %2549 = vmatpush1.bf16.msra.mxu0 0
        %2550 = vmatprep.subr.bf16.mxu0 0
        %2551 = vmatpush1.bf16.msra.mxu0 %v2534
        %2552 = vmatprep.subr.bf16.mxu0 0
        %2553 = vmatpush1.bf16.msra.mxu0 %v2533
        %2554 = vmatprep.subr.bf16.mxu0 0
        %2555 = vmatpush1.bf16.msra.mxu0 %v2532
        %2556 = vmatprep.subr.bf16.mxu0 0
        %2557 = vmatpush1.bf16.msra.mxu0 %v2531
        %2558 = vmatprep.subr.bf16.mxu0 0
        %2559 = vmatpush2.bf16.msra.mxu0 0
        %2560 = vmatprep.subr.bf16.mxu0 0
        %2561 = vmatpush2.bf16.msra.mxu0 0
        %2562 = vmatprep.subr.bf16.mxu0 0
        %2563 = vmatpush2.bf16.msra.mxu0 0
        %2564 = vmatprep.subr.bf16.mxu0 0
        %2565 = vmatpush2.bf16.msra.mxu0 0
        %2566 = vmatprep.subr.bf16.mxu0 0
        %2567 = vmatpush2.bf16.msra.mxu0 0
        %2568 = vmatprep.subr.bf16.mxu0 0
        %2569 = vmatpush2.bf16.msra.mxu0 0
        %2570 = vmatprep.subr.bf16.mxu0 0
        %2571 = vmatpush2.bf16.msra.mxu0 0
        %2572 = vmatprep.subr.bf16.mxu0 0
        %2573 = vmatpush2.bf16.msra.mxu0 0
        %2574 = vmatprep.mubr.bf16.mxu0 0
        %2575 = vmatmul.mubr.bf16.gmra.mxu0 %v2540
        %v2576 = vpop.f32.mrf.mxu0
        %v2577 = vadd.f32 %v2513, %v2576
        %v2578 = vpop.f32.mrf.mxu0
        %v2579 = vpop.f32.mrf.mxu0
        %v2580 = vadd.f32 %v2513, %v2579
        %v2581 = vpop.f32.mrf.mxu0
        %2582 = vdwg.mxu0
        %v2583 = vadd.f32 %v657, %v2577
        %v2584 = vadd.f32 %v658, %v2580
        %v2585 = vsel %vm701, %v2583, 0.0
        %2586 = vadd.xlane.f32.xlu0 %v2585
        %v2587 = vpop.xlane.xlu0 %2586
        %v2588 = vsel %vm701, %v2584, 0.0
        %2589 = vadd.xlane.f32.xlu0 %v2588
        %v2590 = vpop.xlane.xlu0 %2589
        %v2591 = vrcp.pop 64.0
        %v2592 = vmul.f32 %v2587, %v2591
        %v2593 = vmul.f32 %v2590, %v2591
        %v2594 = vsub.f32 %v2583, %v2592
        %v2595 = vsub.f32 %v2584, %v2593
        %v2596 = vmul.f32 %v2594, %v2594
        %v2597 = vmul.f32 %v2595, %v2595
        %v2598 = vsel %vm701, %v2596, 0.0
        %2599 = vadd.xlane.f32.xlu0 %v2598
        %v2600 = vpop.xlane.xlu0 %2599
        %v2601 = vsel %vm701, %v2597, 0.0
        %2602 = vadd.xlane.f32.xlu0 %v2601
        %v2603 = vpop.xlane.xlu0 %2602
        %v2604 = vmul.f32 %v2600, %v2591
        %v2605 = vmul.f32 %v2603, %v2591
        %v2606 = vadd.f32 %v2604, 1e-05
        %v2607 = vadd.f32 %v2605, 1e-05
        %v2608 = vrsqrt.pop %v2606
        %v2609 = vrsqrt.pop %v2607
        %v2610 = vmul.f32 %v2594, %v2608
        %v2611 = vmul.f32 %v2595, %v2609
        %v2612 = vld [vmem:[%s12] sm:$0x1]
        %v2614 = vlaneseq
        %v2615 = vshrl.u32 %v2614, 7
        %v2616 = vsub.s32 0, %v2615
        %v2617 = vrot.slane %v2612, %v2616
        %v2619 = vmul.f32 %v2610, %v2617
        %v2620 = vmul.f32 %v2611, %v2617
        %v2621 = vld [vmem:[%s13] sm:$0x1]
        %v2623 = vlaneseq
        %v2624 = vshrl.u32 %v2623, 7
        %v2625 = vsub.s32 0, %v2624
        %v2626 = vrot.slane %v2621, %v2625
        %v2628 = vadd.f32 %v2619, %v2626
        %v2629 = vadd.f32 %v2620, %v2626
        %v2630 = vpack.c.bf16 %v2629, %v2628
        %v2631 = vld [vmem:[#allocation7] sm:$0xf]
        %v2632 = vld [vmem:[#allocation7 + $0x4] sm:$0xf]
        %v2633 = vld [vmem:[#allocation7 + $0x8] sm:$0xf]
        %v2634 = vld [vmem:[#allocation7 + $0xc] sm:$0xf]
        %v2635 = vld [vmem:[#allocation7 + $0x10] sm:$0xf]
        %v2636 = vld [vmem:[#allocation7 + $0x14] sm:$0xf]
        %v2637 = vld [vmem:[#allocation7 + $0x18] sm:$0xf]
        %v2638 = vld [vmem:[#allocation7 + $0x1c] sm:$0xf]
        %v2639 = vld [vmem:[%s9] sm:$0x1]
        %v2641 = vlaneseq
        %v2642 = vshrl.u32 %v2641, 7
        %v2643 = vsub.s32 0, %v2642
        %v2644 = vrot.slane %v2639, %v2643
        %v2654 = vunpack.c.l.b16 %v2631
        %v2655 = vunpack.c.l.b16 %v2632
        %v2656 = vunpack.c.l.b16 %v2633
        %v2657 = vunpack.c.l.b16 %v2634
        %v2658 = vunpack.c.l.b16 %v2635
        %v2659 = vunpack.c.l.b16 %v2636
        %v2660 = vunpack.c.l.b16 %v2637
        %v2661 = vunpack.c.l.b16 %v2638
        %v2662 = vpack.c.b16 %v2655, %v2654
        %v2663 = vpack.c.b16 %v2657, %v2656
        %v2664 = vpack.c.b16 %v2659, %v2658
        %v2665 = vpack.c.b16 %v2661, %v2660
        %v2671 = vsel %vm701, %v2630, 0
        %2673 = vmatprep.subr.bf16.mxu0 0
        %2674 = vmatpush1.bf16.msra.mxu0 0
        %2675 = vmatprep.subr.bf16.mxu0 0
        %2676 = vmatpush1.bf16.msra.mxu0 0
        %2677 = vmatprep.subr.bf16.mxu0 0
        %2678 = vmatpush1.bf16.msra.mxu0 0
        %2679 = vmatprep.subr.bf16.mxu0 0
        %2680 = vmatpush1.bf16.msra.mxu0 0
        %2681 = vmatprep.subr.bf16.mxu0 0
        %2682 = vmatpush1.bf16.msra.mxu0 %v2665
        %2683 = vmatprep.subr.bf16.mxu0 0
        %2684 = vmatpush1.bf16.msra.mxu0 %v2664
        %2685 = vmatprep.subr.bf16.mxu0 0
        %2686 = vmatpush1.bf16.msra.mxu0 %v2663
        %2687 = vmatprep.subr.bf16.mxu0 0
        %2688 = vmatpush1.bf16.msra.mxu0 %v2662
        %2689 = vmatprep.subr.bf16.mxu0 0
        %2690 = vmatpush2.bf16.msra.mxu0 0
        %2691 = vmatprep.subr.bf16.mxu0 0
        %2692 = vmatpush2.bf16.msra.mxu0 0
        %2693 = vmatprep.subr.bf16.mxu0 0
        %2694 = vmatpush2.bf16.msra.mxu0 0
        %2695 = vmatprep.subr.bf16.mxu0 0
        %2696 = vmatpush2.bf16.msra.mxu0 0
        %2697 = vmatprep.subr.bf16.mxu0 0
        %2698 = vmatpush2.bf16.msra.mxu0 0
        %2699 = vmatprep.subr.bf16.mxu0 0
        %2700 = vmatpush2.bf16.msra.mxu0 0
        %2701 = vmatprep.subr.bf16.mxu0 0
        %2702 = vmatpush2.bf16.msra.mxu0 0
        %2703 = vmatprep.subr.bf16.mxu0 0
        %2704 = vmatpush2.bf16.msra.mxu0 0
        %2705 = vmatprep.mubr.bf16.mxu0 0
        %2706 = vmatmul.mubr.bf16.gmra.mxu0 %v2671
        %v2707 = vpop.f32.mrf.mxu0
        %v2708 = vadd.f32 %v2644, %v2707
        %v2709 = vpop.f32.mrf.mxu0
        %v2710 = vpop.f32.mrf.mxu0
        %v2711 = vadd.f32 %v2644, %v2710
        %v2712 = vpop.f32.mrf.mxu0
        %2713 = vdwg.mxu0
        %v2714 = vmax.f32 %v2708, 0.0
        %v2715 = vmax.f32 %v2711, 0.0
        %v2716 = vpack.c.bf16 %v2715, %v2714
        %v2717 = vld [vmem:[%s10] sm:$0xf]
        %v2718 = vld [vmem:[%s10 + $0x4] sm:$0xf]
        %v2719 = vld [vmem:[%s10 + $0x8] sm:$0xf]
        %v2720 = vld [vmem:[%s10 + $0xc] sm:$0xf]
        %v2721 = vld [vmem:[%s10 + $0x10] sm:$0xf]
        %v2722 = vld [vmem:[%s10 + $0x14] sm:$0xf]
        %v2723 = vld [vmem:[%s10 + $0x18] sm:$0xf]
        %v2724 = vld [vmem:[%s10 + $0x1c] sm:$0xf]
        %v2725 = vld [vmem:[%s10 + $0x20] sm:$0xf]
        %v2726 = vld [vmem:[%s10 + $0x24] sm:$0xf]
        %v2727 = vld [vmem:[%s10 + $0x28] sm:$0xf]
        %v2728 = vld [vmem:[%s10 + $0x2c] sm:$0xf]
        %v2729 = vld [vmem:[%s10 + $0x30] sm:$0xf]
        %v2730 = vld [vmem:[%s10 + $0x34] sm:$0xf]
        %v2731 = vld [vmem:[%s10 + $0x38] sm:$0xf]
        %v2732 = vld [vmem:[%s10 + $0x3c] sm:$0xf]
        %v2733 = vld [vmem:[%s11] sm:$0x1]
        %v2735 = vlaneseq
        %v2736 = vshrl.u32 %v2735, 7
        %v2737 = vsub.s32 0, %v2736
        %v2738 = vrot.slane %v2733, %v2737
        %v2756 = vunpack.c.l.b16 %v2717
        %v2757 = vunpack.c.l.b16 %v2718
        %v2758 = vunpack.c.l.b16 %v2719
        %v2759 = vunpack.c.l.b16 %v2720
        %v2760 = vunpack.c.l.b16 %v2721
        %v2761 = vunpack.c.l.b16 %v2722
        %v2762 = vunpack.c.l.b16 %v2723
        %v2763 = vunpack.c.l.b16 %v2724
        %v2764 = vunpack.c.l.b16 %v2725
        %v2765 = vunpack.c.l.b16 %v2726
        %v2766 = vunpack.c.l.b16 %v2727
        %v2767 = vunpack.c.l.b16 %v2728
        %v2768 = vunpack.c.l.b16 %v2729
        %v2769 = vunpack.c.l.b16 %v2730
        %v2770 = vunpack.c.l.b16 %v2731
        %v2771 = vunpack.c.l.b16 %v2732
        %v2772 = vpack.c.b16 %v2757, %v2756
        %v2773 = vpack.c.b16 %v2759, %v2758
        %v2774 = vpack.c.b16 %v2761, %v2760
        %v2775 = vpack.c.b16 %v2763, %v2762
        %v2776 = vpack.c.b16 %v2765, %v2764
        %v2777 = vpack.c.b16 %v2767, %v2766
        %v2778 = vpack.c.b16 %v2769, %v2768
        %v2779 = vpack.c.b16 %v2771, %v2770
        %2788 = vmatprep.subr.bf16.mxu0 0
        %2789 = vmatpush1.bf16.msra.mxu0 %v2779
        %2790 = vmatprep.subr.bf16.mxu0 0
        %2791 = vmatpush1.bf16.msra.mxu0 %v2778
        %2792 = vmatprep.subr.bf16.mxu0 0
        %2793 = vmatpush1.bf16.msra.mxu0 %v2777
        %2794 = vmatprep.subr.bf16.mxu0 0
        %2795 = vmatpush1.bf16.msra.mxu0 %v2776
        %2796 = vmatprep.subr.bf16.mxu0 0
        %2797 = vmatpush1.bf16.msra.mxu0 %v2775
        %2798 = vmatprep.subr.bf16.mxu0 0
        %2799 = vmatpush1.bf16.msra.mxu0 %v2774
        %2800 = vmatprep.subr.bf16.mxu0 0
        %2801 = vmatpush1.bf16.msra.mxu0 %v2773
        %2802 = vmatprep.subr.bf16.mxu0 0
        %2803 = vmatpush1.bf16.msra.mxu0 %v2772
        %2804 = vmatprep.subr.bf16.mxu0 0
        %2805 = vmatpush2.bf16.msra.mxu0 0
        %2806 = vmatprep.subr.bf16.mxu0 0
        %2807 = vmatpush2.bf16.msra.mxu0 0
        %2808 = vmatprep.subr.bf16.mxu0 0
        %2809 = vmatpush2.bf16.msra.mxu0 0
        %2810 = vmatprep.subr.bf16.mxu0 0
        %2811 = vmatpush2.bf16.msra.mxu0 0
        %2812 = vmatprep.subr.bf16.mxu0 0
        %2813 = vmatpush2.bf16.msra.mxu0 0
        %2814 = vmatprep.subr.bf16.mxu0 0
        %2815 = vmatpush2.bf16.msra.mxu0 0
        %2816 = vmatprep.subr.bf16.mxu0 0
        %2817 = vmatpush2.bf16.msra.mxu0 0
        %2818 = vmatprep.subr.bf16.mxu0 0
        %2819 = vmatpush2.bf16.msra.mxu0 0
        %2820 = vmatprep.mubr.bf16.mxu0 0
        %2821 = vmatmul.mubr.bf16.gmra.mxu0 %v2716
        %v2822 = vpop.f32.mrf.mxu0
        %v2823 = vadd.f32 %v2738, %v2822
        %v2824 = vpop.f32.mrf.mxu0
        %v2825 = vpop.f32.mrf.mxu0
        %v2826 = vadd.f32 %v2738, %v2825
        %v2827 = vpop.f32.mrf.mxu0
        %2828 = vdwg.mxu0
        %v2829 = vadd.f32 %v2628, %v2823
        %v2830 = vadd.f32 %v2629, %v2826
        %v2831 = vsel %vm701, %v2829, 0.0
        %2832 = vadd.xlane.f32.xlu0 %v2831
        %v2833 = vpop.xlane.xlu0 %2832
        %v2834 = vsel %vm701, %v2830, 0.0
        %2835 = vadd.xlane.f32.xlu0 %v2834
        %v2836 = vpop.xlane.xlu0 %2835
        %v2837 = vmul.f32 %v2833, %v2591
        %v2838 = vmul.f32 %v2836, %v2591
        %v2839 = vsub.f32 %v2829, %v2837
        %v2840 = vsub.f32 %v2830, %v2838
        %v2841 = vmul.f32 %v2839, %v2839
        %v2842 = vmul.f32 %v2840, %v2840
        %v2843 = vsel %vm701, %v2841, 0.0
        %2844 = vadd.xlane.f32.xlu0 %v2843
        %v2845 = vpop.xlane.xlu0 %2844
        %v2846 = vsel %vm701, %v2842, 0.0
        %2847 = vadd.xlane.f32.xlu0 %v2846
        %v2848 = vpop.xlane.xlu0 %2847
        %v2849 = vmul.f32 %v2845, %v2591
        %v2850 = vmul.f32 %v2848, %v2591
        %v2851 = vadd.f32 %v2849, 1e-05
        %v2852 = vadd.f32 %v2850, 1e-05
        %v2853 = vrsqrt.pop %v2851
        %v2854 = vrsqrt.pop %v2852
        %v2855 = vmul.f32 %v2839, %v2853
        %v2856 = vmul.f32 %v2840, %v2854
        %v2857 = vld [vmem:[%s14] sm:$0x1]
        %v2859 = vlaneseq
        %v2860 = vshrl.u32 %v2859, 7
        %v2861 = vsub.s32 0, %v2860
        %v2862 = vrot.slane %v2857, %v2861
        %v2864 = vmul.f32 %v2855, %v2862
        %v2865 = vmul.f32 %v2856, %v2862
        %v2866 = vld [vmem:[%s15] sm:$0x1]
        %v2868 = vlaneseq
        %v2869 = vshrl.u32 %v2868, 7
        %v2870 = vsub.s32 0, %v2869
        %v2871 = vrot.slane %v2866, %v2870
        %v2873 = vadd.f32 %v2864, %v2871
        %v2874 = vadd.f32 %v2865, %v2871
        %2875 = vst.msk [vmem:[%s631] sm:$0xff] %vm701, %v2873
        %2876 = vst.msk [vmem:[%s631 + $0x8] sm:$0xff] %vm701, %v2874
        %s2877 = sand.u32 %s407, 1
        %s2878 = scalar_lea.sflag [#allocation4], %s2877
        %s2879 = sand.u32 %s407, 1
        %s2880 = smul.addr %s2879, 16
        %s2881 = scalar_lea.vmem [#allocation8], %s2880
        %s2882 = sand.u32 %s435, 1
        %s2883 = scalar_lea.sflag [#allocation10], %s2882
        %s2884 = sand.u32 %s435, 1
        %s2885 = smul.addr %s2884, 64
        %s2886 = scalar_lea.vmem [#allocation9], %s2885
        // Predicated region
        $region97: #{tpu_custom_call.1} parent=83 // pred_check
          %p2887 = pneg %p417
        $region98: #{tpu_custom_call.1} parent=83 // pred_check_branch
          %2889 = sbr.rel (%p2887) target = $region100
        $region99: #{tpu_custom_call.1} parent=83 // pred_region
          %s2890 = smul.u32 2, %s42
          %s2892 = ssub.s32 256, 256
          %2893 = vsyncadd %s2878, %s2892
          %s2894 = smul.addr %s41, 2
          %s2895 = sadd.s32 %s2890, %s2894
          %s2896 = smul.addr %s2895, 128
          %s2897 = scalar_lea.hbm %s16, %s2896
          %s2898 = sshll.u32 %s2881, 4
          %s2899 = int_to_ptr.vmem [resolvable:$true] %s2898
          %2904 = dma.vmem_to_hbm [thread:$0]  %s2899, 256, %s2897, %s2878, 128, 128, 8
        $region100: #{tpu_custom_call.1} parent=83 // pred_fallthru
          _
        // Predicated region
        $region101: #{tpu_custom_call.1} parent=83 // pred_check
          %p2905 = pneg %p445
        $region102: #{tpu_custom_call.1} parent=83 // pred_check_branch
          %2907 = sbr.rel (%p2905) target = $region104
        $region103: #{tpu_custom_call.1} parent=83 // pred_region
          %s2908 = smul.u32 2, %s42
          %s2910 = ssub.s32 1024, 1024
          %2911 = vsyncadd %s2883, %s2910
          %s2912 = smul.addr %s41, 8
          %s2913 = sadd.s32 %s2908, %s2912
          %s2914 = smul.addr %s2913, 128
          %s2915 = scalar_lea.hbm %s17, %s2914
          %s2916 = sshll.u32 %s2886, 4
          %s2917 = int_to_ptr.vmem [resolvable:$true] %s2916
          %2922 = dma.vmem_to_hbm [thread:$0]  %s2917, 1024, %s2915, %s2883, 128, 128, 8
        $region104: #{tpu_custom_call.1} parent=83 // pred_fallthru
          _
      $region84: #{tpu_custom_call.1} parent=5 // pred_fallthru
        _
      %p2923 = scmp.le.s32.totalorder 2, %s32
      // Predicated region
      $region105: #{tpu_custom_call.1} parent=5 // pred_check
        %p2924 = pneg %p2923
      $region106: #{tpu_custom_call.1} parent=5 // pred_check_branch
        %2926 = sbr.rel (%p2924) target = $region108
      $region107: #{tpu_custom_call.1} parent=5 // pred_region
        %s2927 = ssub.s32 %s32, 2
        // Predicated region
        $region109: #{tpu_custom_call.1} parent=107 // pred_check
          %p2928 = pneg %p423
        $region110: #{tpu_custom_call.1} parent=107 // pred_check_branch
          %2930 = sbr.rel (%p2928) target = $region112
        $region111: #{tpu_custom_call.1} parent=107 // pred_region
          %s2931 = sand.u32 %s408, 1
          %s2932 = scalar_lea.sflag [#allocation4], %s2931
          %s2933 = sand.u32 %s408, 1
          %s2934 = smul.addr %s2933, 16
          %s2935 = scalar_lea.vmem [#allocation8], %s2934
          %2936 = dma.done %s2932, 256
        $region112: #{tpu_custom_call.1} parent=107 // pred_fallthru
          _
        // Predicated region
        $region113: #{tpu_custom_call.1} parent=107 // pred_check
          %p2937 = pneg %p451
        $region114: #{tpu_custom_call.1} parent=107 // pred_check_branch
          %2939 = sbr.rel (%p2937) target = $region116
        $region115: #{tpu_custom_call.1} parent=107 // pred_region
          %s2940 = sand.u32 %s436, 1
          %s2941 = scalar_lea.sflag [#allocation10], %s2940
          %s2942 = sand.u32 %s436, 1
          %s2943 = smul.addr %s2942, 64
          %s2944 = scalar_lea.vmem [#allocation9], %s2943
          %2945 = dma.done %s2941, 1024
        $region116: #{tpu_custom_call.1} parent=107 // pred_fallthru
          _
      $region108: #{tpu_custom_call.1} parent=5 // pred_fallthru
        _
    $region6: #{tpu_custom_call.1} parent=1 // loop_footer
      %s36 = sadd.s32 1, %s32
    $region7: #{tpu_custom_call.1} parent=1 // loop_footer_branch
      %31 = sbr.rel target = $region3
    $region8: #{tpu_custom_call.1} parent=1 // loop_exit
      _
    %2946 = vsyncpa [#allocation3], 1
    %s2947 = scalar_lea.sflag [#allocation3], 1
    %2948 = vsyncpa %s2947, 1
    %2949 = vsyncpa [#allocation6], 1
    %2950 = vsyncpa [#allocation4], 1
    %s2951 = scalar_lea.sflag [#allocation4], 1
    %2952 = vsyncpa %s2951, 1
    %2953 = vsyncpa [#allocation10], 1
    %s2954 = scalar_lea.sflag [#allocation10], 1
    %2955 = vsyncpa %s2954, 1

</llo_original>
